<compile_context>
chip_gen: v7x
topology: tpu7x:2x2x1
jax: 0.10.0
libtpu: 0.0.40
codegen_flags: <defaults>
</compile_context>

<pallas_src>
import jax
import jax.numpy as jnp
import numpy as np
from jax.experimental import pallas as pl
from jax.experimental.pallas import tpu as pltpu

# ---- model dims (PyTorch defaults) ----
HIDDEN = 128
NUM_ENC_XYZ = 6
NUM_ENC_DIR = 4
DIM_XYZ = 3 + 2 * 3 * NUM_ENC_XYZ      # 39
DIM_DIR = 3 + 2 * 3 * NUM_ENC_DIR      # 27
DIM_IN = DIM_XYZ + DIM_DIR             # 66
HALF = HIDDEN // 2                     # 64


def _cdiv(a, b):
    return -(-a // b)


def _round_up(v, m):
    return ((v + m - 1) // m) * m


def _device_kind():
    try:
        return jax.devices()[0].device_kind.lower()
    except Exception:
        return ""


def _default_alpha_via_vpu():
    # Generations with a 128-wide MXU: a 129-wide fused feat/alpha head costs
    # a second (almost empty) MXU pass there, so compute alpha on the VPU/XLU.
    kind = _device_kind()
    return any(t in kind for t in ("v2", "v3", "v4", "v5"))


def _vmem_limit_bytes(tile, kind):
    # Rough worst-case resident bytes: I/O double buffers + lane-padded
    # (tile, <=256)-lane f32/bf16 intermediates + resident weights + slack.
    est = tile * 10_000 + (4 << 20)
    cap = (48 << 20) if ("v7" in kind or "tpu7" in kind) else (80 << 20)
    return int(min(cap, max(32 << 20, est)))


def _pick_tiling(N, max_tile):
    """Adaptive row tiling.

    - large tiles amortize the ~0.35us per-grid-step pipeline overhead
    - tile chosen relative to N so padding waste is minimal for awkward N
    - at least 2 grid steps (when N allows) so the "parallel" axis can shard
      across both TensorCores on v7x
    """
    n = max(int(N), 1)
    max_tile = max(8, _round_up(min(int(max_tile), n), 8))
    min_steps = 2 if n > 8 else 1
    steps = max(min_steps, _cdiv(_round_up(n, 8), max_tile))
    tile = min(max_tile, _round_up(_cdiv(n, steps), 8))
    n_pad = steps * tile
    return tile, steps, n_pad


def _make_kernel(alpha_via_vpu):
    f32, bf16 = jnp.float32, jnp.bfloat16

    def _trunk(x_ref, wtop_ref, btop_ref, wx_ref, bx_ref):
        x = x_ref[...].astype(bf16)                                # (tile, 66)
        # fused layer1 + view-dependent partial of layers_dir[0]:
        #   top[:, :128] = xyz @ W1 + b1            (layer1, NO ReLU)
        #   top[:, 128:] = view @ Wdir[128:] + bdir (added into hd later)
        top = jnp.dot(x, wtop_ref[...], preferred_element_type=f32) + btop_ref[...]
        h = top[:, :HIDDEN].astype(bf16)
        view_part = top[:, HIDDEN:]                                # (tile, 64) f32
        # 3x (Linear(128,128) -> ReLU); skip-concat never fires with defaults.
        for i in range(3):
            z = jnp.dot(h, wx_ref[i], preferred_element_type=f32) + bx_ref[i]
            h = jnp.maximum(z, 0.0).astype(bf16)   # fused ReLU + bf16 downcast
        return h, view_part

    def _tail(view_part, feat, alpha, wdir_f_ref, wrgb4_ref, brgb4_ref, o_ref):
        # layers_dir[0] on cat(feat, view): feat part via MXU, view part was
        # precomputed in the fused top matmul (bias bdir already included).
        hd = jnp.dot(feat, wdir_f_ref[...], preferred_element_type=f32) + view_part
        hd = jnp.maximum(hd, 0.0).astype(bf16)
        # fused rgb/alpha output: rgb in lanes 0..2 (zero-padded wrgb),
        # alpha added into lane 3 with a lane mask (no lane-axis concat).
        out4 = jnp.dot(hd, wrgb4_ref[...], preferred_element_type=f32) + brgb4_ref[...]
        lane = jax.lax.broadcasted_iota(jnp.int32, (1, 4), 1)
        o_ref[...] = out4 + jnp.where(lane == 3, alpha, 0.0)

    if alpha_via_vpu:
        def kernel(x_ref, wtop_ref, btop_ref, wx_ref, bx_ref,
                   wfeat_ref, bfeat_ref, wa_row_ref, ba_ref,
                   wdir_f_ref, wrgb4_ref, brgb4_ref, o_ref):
            h, view_part = _trunk(x_ref, wtop_ref, btop_ref, wx_ref, bx_ref)
            feat = jnp.dot(h, wfeat_ref[...], preferred_element_type=f32) + bfeat_ref[...]
            feat = jnp.maximum(feat, 0.0).astype(bf16)
            # 1-wide alpha head on VPU (mul) + XLU (lane reduce): saves one
            # nearly-empty 128-wide MXU pass on v5e-class chips.
            alpha = (jnp.sum(h.astype(f32) * wa_row_ref[...], axis=-1, keepdims=True)
                     + ba_ref[...])
            _tail(view_part, feat, alpha, wdir_f_ref, wrgb4_ref, brgb4_ref, o_ref)
    else:
        def kernel(x_ref, wtop_ref, btop_ref, wx_ref, bx_ref,
                   wfa_ref, bfa_ref,
                   wdir_f_ref, wrgb4_ref, brgb4_ref, o_ref):
            h, view_part = _trunk(x_ref, wtop_ref, btop_ref, wx_ref, bx_ref)
            # fused feat/alpha head: one (128,129) matmul (single 256-wide pass)
            fa = jnp.dot(h, wfa_ref[...], preferred_element_type=f32) + bfa_ref[...]
            feat = jnp.maximum(fa[:, :HIDDEN], 0.0).astype(bf16)
            alpha = fa[:, HIDDEN:HIDDEN + 1]       # bias already included
            _tail(view_part, feat, alpha, wdir_f_ref, wrgb4_ref, brgb4_ref, o_ref)

    return kernel


def init_params(key):
    """Deterministic init mimicking PyTorch Linear's U(-1/sqrt(fan_in), ...).

    All weights stored as (in_features, out_features) so forward is x @ W + b.
    """
    def linear(key, fan_in, fan_out):
        kw, kb = jax.random.split(key)
        bound = 1.0 / np.sqrt(fan_in)
        w = jax.random.uniform(kw, (fan_in, fan_out), jnp.float32, -bound, bound)
        b = jax.random.uniform(kb, (1, fan_out), jnp.float32, -bound, bound)
        return w, b

    keys = jax.random.split(key, 8)
    w1, b1 = linear(keys[0], DIM_XYZ, HIDDEN)
    wx0, bx0 = linear(keys[1], HIDDEN, HIDDEN)
    wx1, bx1 = linear(keys[2], HIDDEN, HIDDEN)
    wx2, bx2 = linear(keys[3], HIDDEN, HIDDEN)
    wfeat, bfeat = linear(keys[4], HIDDEN, HIDDEN)
    walpha, balpha = linear(keys[5], HIDDEN, 1)
    wdir, bdir = linear(keys[6], HIDDEN + DIM_DIR, HALF)
    wrgb, brgb = linear(keys[7], HALF, 3)
    return dict(w1=w1, b1=b1, wx0=wx0, bx0=bx0, wx1=wx1, bx1=bx1, wx2=wx2,
                bx2=bx2, wfeat=wfeat, bfeat=bfeat, walpha=walpha,
                balpha=balpha, wdir=wdir, bdir=bdir, wrgb=wrgb, brgb=brgb)


def _prepare_weights(params, alpha_via_vpu):
    """Pack / pad / bf16-cast weights for the kernel (tiny host-side glue)."""
    f32, bf16 = jnp.float32, jnp.bfloat16

    # fused top weight (66, 192): columns 0..127 = layer1 (xyz rows only),
    # columns 128..191 = view part of layers_dir[0] (view rows only).
    wtop = jnp.zeros((DIM_IN, HIDDEN + HALF), f32)
    wtop = wtop.at[:DIM_XYZ, :HIDDEN].set(params["w1"])
    wtop = wtop.at[DIM_XYZ:, HIDDEN:].set(params["wdir"][HIDDEN:])
    wtop = wtop.astype(bf16)
    btop = jnp.concatenate([params["b1"], params["bdir"]], axis=1)            # (1,192)

    # stacked hidden layers (fewer DMA descriptors, resident across the grid)
    wx = jnp.stack([params["wx0"], params["wx1"], params["wx2"]]).astype(bf16)  # (3,128,128)
    bx = jnp.stack([params["bx0"], params["bx1"], params["bx2"]])               # (3,1,128)

    # feat/alpha head
    if alpha_via_vpu:
        head = [params["wfeat"].astype(bf16),            # (128,128)
                params["bfeat"],                         # (1,128)
                params["walpha"].reshape(1, HIDDEN),     # (1,128) f32 row
                params["balpha"]]                        # (1,1)
    else:
        wfa = jnp.concatenate([params["wfeat"], params["walpha"]], axis=1).astype(bf16)  # (128,129)
        bfa = jnp.concatenate([params["bfeat"], params["balpha"]], axis=1)               # (1,129)
        head = [wfa, bfa]

    # feat part of layers_dir[0] (view part + bdir live in wtop/btop)
    wdir_f = params["wdir"][:HIDDEN].astype(bf16)                                        # (128,64)

    # fused rgb head padded to 4 lanes (lane 3 receives alpha in-kernel)
    wrgb4 = jnp.concatenate([params["wrgb"], jnp.zeros((HALF, 1), f32)], axis=1).astype(bf16)
    brgb4 = jnp.concatenate([params["brgb"], jnp.zeros((1, 1), f32)], axis=1)

    return [wtop, btop, wx, bx] + head + [wdir_f, wrgb4, brgb4]


def flexible_nerf_forward(x, params, *, tile_n=2048, alpha_via_vpu=None):
    """x: (N, DIM_IN) float32 -> (N, 4) float32 (rgb, alpha).

    tile_n is the per-grid-step row budget (sweepable, e.g. 512..8192).
    """
    N = x.shape[0]
    if alpha_via_vpu is None:
        alpha_via_vpu = _default_alpha_via_vpu()

    kind = _device_kind()
    tile, steps, n_pad = _pick_tiling(N, tile_n)
    if n_pad != N:
        x = jnp.pad(x, ((0, n_pad - N), (0, 0)))

    weight_args = _prepare_weights(params, alpha_via_vpu)
    kernel = _make_kernel(alpha_via_vpu)

    def resident_spec(a):
        zeros = (0,) * a.ndim
        return pl.BlockSpec(a.shape, lambda i, z=zeros: z)

    in_specs = [pl.BlockSpec((tile, DIM_IN), lambda i: (i, 0))] + \
               [resident_spec(a) for a in weight_args]

    out = pl.pallas_call(
        kernel,
        out_shape=jax.ShapeDtypeStruct((n_pad, 4), jnp.float32),
        grid_spec=pltpu.PrefetchScalarGridSpec(
            num_scalar_prefetch=0,
            grid=(steps,),
            in_specs=in_specs,
            out_specs=pl.BlockSpec((tile, 4), lambda i: (i, 0)),
        ),
        compiler_params=pltpu.CompilerParams(
            dimension_semantics=("parallel",),
            vmem_limit_bytes=_vmem_limit_bytes(tile, kind),
        ),
    )(x, *weight_args)

    if n_pad != N:
        out = out[:N]
    return out


def reference_forward(x, params):
    """Pure-JAX f32 reference matching the PyTorch forward."""
    xyz = x[:, :DIM_XYZ]
    view = x[:, DIM_XYZ:]
    h = xyz @ params["w1"] + params["b1"]
    for w, b in ((params["wx0"], params["bx0"]),
                 (params["wx1"], params["bx1"]),
                 (params["wx2"], params["bx2"])):
        h = jax.nn.relu(h @ w + b)
    feat = jax.nn.relu(h @ params["wfeat"] + params["bfeat"])
    alpha = h @ params["walpha"] + params["balpha"]
    hd = jnp.concatenate([feat, view], axis=-1)
    hd = jax.nn.relu(hd @ params["wdir"] + params["bdir"])
    rgb = hd @ params["wrgb"] + params["brgb"]
    return jnp.concatenate([rgb, alpha], axis=-1)


if __name__ == "__main__":
    key = jax.random.PRNGKey(0)
    kp, kx = jax.random.split(key)
    params = init_params(kp)

    N = 512  # small demo size; adaptive tiling picks 2 grid steps of 256 rows
    x = jax.random.normal(kx, (N, DIM_IN), dtype=jnp.float32)

    ref = jax.block_until_ready(reference_forward(x, params))

    # Exercise both head variants (fused 129-wide MXU head and VPU/XLU alpha);
    # the default picks the right one for the current chip generation.
    for use_vpu_alpha in (False, True):
        out = flexible_nerf_forward(x, params, alpha_via_vpu=use_vpu_alpha)
        out = jax.block_until_ready(out)
        assert out.shape == (N, 4)
        err = np.asarray(jnp.abs(out - ref))
        tol = 5e-2 + 5e-2 * np.asarray(jnp.abs(ref))
        if not np.all(np.isfinite(err)) or not np.all(err <= tol):
            raise AssertionError(
                f"Pallas output mismatch vs reference "
                f"(alpha_via_vpu={use_vpu_alpha}): max_err={float(err.max())}")

    # Also run once with the chip-detected default path.
    out = jax.block_until_ready(flexible_nerf_forward(x, params))
    assert out.shape == (N, 4)

    print("KERNEL_OK")
</pallas_src>

<mosaic_0001>
module attributes {stable_mosaic.version = 11 : i64} {
  func.func @kernel(%arg0: i32, %arg1: memref<256x66xf32, #tpu.memory_space<vmem>>, %arg2: memref<66x192xbf16, #tpu.memory_space<vmem>>, %arg3: memref<1x192xf32, #tpu.memory_space<vmem>>, %arg4: memref<3x128x128xbf16, #tpu.memory_space<vmem>>, %arg5: memref<3x1x128xf32, #tpu.memory_space<vmem>>, %arg6: memref<128x129xbf16, #tpu.memory_space<vmem>>, %arg7: memref<1x129xf32, #tpu.memory_space<vmem>>, %arg8: memref<128x64xbf16, #tpu.memory_space<vmem>>, %arg9: memref<64x4xbf16, #tpu.memory_space<vmem>>, %arg10: memref<1x4xf32, #tpu.memory_space<vmem>>, %arg11: memref<256x4xf32, #tpu.memory_space<vmem>>) attributes {dimension_semantics = [#tpu.dimension_semantics<parallel>], iteration_bounds = array<i64: 2>, scalar_prefetch = 0 : i64, scratch_operands = 0 : i64, tpu.core_type = #tpu.core_type<tc>, window_params = [{transform_indices = @transform_0, window_bounds = array<i64: 256, 66>}, {pipeline_mode = #tpu.pipeline_mode<synchronous>, transform_indices = @transform_1, window_bounds = array<i64: 66, 192>}, {pipeline_mode = #tpu.pipeline_mode<synchronous>, transform_indices = @transform_2, window_bounds = array<i64: 1, 192>}, {pipeline_mode = #tpu.pipeline_mode<synchronous>, transform_indices = @transform_3, window_bounds = array<i64: 3, 128, 128>}, {pipeline_mode = #tpu.pipeline_mode<synchronous>, transform_indices = @transform_4, window_bounds = array<i64: 3, 1, 128>}, {pipeline_mode = #tpu.pipeline_mode<synchronous>, transform_indices = @transform_5, window_bounds = array<i64: 128, 129>}, {pipeline_mode = #tpu.pipeline_mode<synchronous>, transform_indices = @transform_6, window_bounds = array<i64: 1, 129>}, {pipeline_mode = #tpu.pipeline_mode<synchronous>, transform_indices = @transform_7, window_bounds = array<i64: 128, 64>}, {pipeline_mode = #tpu.pipeline_mode<synchronous>, transform_indices = @transform_8, window_bounds = array<i64: 64, 4>}, {pipeline_mode = #tpu.pipeline_mode<synchronous>, transform_indices = @transform_9, window_bounds = array<i64: 1, 4>}, {transform_indices = @transform_10, window_bounds = array<i64: 256, 4>}]} {
    %c0 = arith.constant 0 : index
    %c0_0 = arith.constant 0 : index
    %0 = vector.load %arg1[%c0, %c0_0] : memref<256x66xf32, #tpu.memory_space<vmem>>, vector<256x66xf32>
    %1 = arith.truncf %0 : vector<256x66xf32> to vector<256x66xbf16>
    %c0_1 = arith.constant 0 : index
    %c0_2 = arith.constant 0 : index
    %2 = vector.load %arg2[%c0_1, %c0_2] : memref<66x192xbf16, #tpu.memory_space<vmem>>, vector<66x192xbf16>
    %cst = arith.constant dense<0.000000e+00> : vector<256x192xf32>
    %3 = tpu.matmul %1, %2, %cst {dimension_numbers = #tpu.dot_dimension_numbers<[1], [0], [0], [1], [0, 0, 1, 1], [], []>} : vector<256x66xbf16>, vector<66x192xbf16>, vector<256x192xf32> -> vector<256x192xf32>
    %c0_3 = arith.constant 0 : index
    %c0_4 = arith.constant 0 : index
    %4 = vector.load %arg3[%c0_3, %c0_4] : memref<1x192xf32, #tpu.memory_space<vmem>>, vector<1x192xf32>
    %5 = vector.broadcast %4 : vector<1x192xf32> to vector<256x192xf32>
    %6 = arith.addf %3, %5 : vector<256x192xf32>
    %7 = vector.extract_strided_slice %6 {offsets = [0, 0], sizes = [256, 128], strides = [1, 1]} : vector<256x192xf32> to vector<256x128xf32>
    %8 = arith.truncf %7 : vector<256x128xf32> to vector<256x128xbf16>
    %9 = vector.extract_strided_slice %6 {offsets = [0, 128], sizes = [256, 64], strides = [1, 1]} : vector<256x192xf32> to vector<256x64xf32>
    %c0_5 = arith.constant 0 : index
    %c0_6 = arith.constant 0 : index
    %c0_7 = arith.constant 0 : index
    %10 = vector.load %arg4[%c0_5, %c0_6, %c0_7] : memref<3x128x128xbf16, #tpu.memory_space<vmem>>, vector<1x128x128xbf16>
    %11 = vector.shape_cast %10 : vector<1x128x128xbf16> to vector<128x128xbf16>
    %cst_8 = arith.constant dense<0.000000e+00> : vector<256x128xf32>
    %12 = tpu.matmul %8, %11, %cst_8 {dimension_numbers = #tpu.dot_dimension_numbers<[1], [0], [0], [1], [0, 0, 1, 1], [], []>} : vector<256x128xbf16>, vector<128x128xbf16>, vector<256x128xf32> -> vector<256x128xf32>
    %c0_9 = arith.constant 0 : index
    %c0_10 = arith.constant 0 : index
    %c0_11 = arith.constant 0 : index
    %13 = vector.load %arg5[%c0_9, %c0_10, %c0_11] : memref<3x1x128xf32, #tpu.memory_space<vmem>>, vector<1x1x128xf32>
    %14 = vector.shape_cast %13 : vector<1x1x128xf32> to vector<1x128xf32>
    %15 = vector.broadcast %14 : vector<1x128xf32> to vector<256x128xf32>
    %16 = arith.addf %12, %15 : vector<256x128xf32>
    %cst_12 = arith.constant 0.000000e+00 : f32
    %17 = vector.broadcast %cst_12 : f32 to vector<256x128xf32>
    %18 = arith.maximumf %16, %17 : vector<256x128xf32>
    %19 = arith.truncf %18 : vector<256x128xf32> to vector<256x128xbf16>
    %c1 = arith.constant 1 : index
    %c0_13 = arith.constant 0 : index
    %c0_14 = arith.constant 0 : index
    %20 = vector.load %arg4[%c1, %c0_13, %c0_14] : memref<3x128x128xbf16, #tpu.memory_space<vmem>>, vector<1x128x128xbf16>
    %21 = vector.shape_cast %20 : vector<1x128x128xbf16> to vector<128x128xbf16>
    %cst_15 = arith.constant dense<0.000000e+00> : vector<256x128xf32>
    %22 = tpu.matmul %19, %21, %cst_15 {dimension_numbers = #tpu.dot_dimension_numbers<[1], [0], [0], [1], [0, 0, 1, 1], [], []>} : vector<256x128xbf16>, vector<128x128xbf16>, vector<256x128xf32> -> vector<256x128xf32>
    %c1_16 = arith.constant 1 : index
    %c0_17 = arith.constant 0 : index
    %c0_18 = arith.constant 0 : index
    %23 = vector.load %arg5[%c1_16, %c0_17, %c0_18] : memref<3x1x128xf32, #tpu.memory_space<vmem>>, vector<1x1x128xf32>
    %24 = vector.shape_cast %23 : vector<1x1x128xf32> to vector<1x128xf32>
    %25 = vector.broadcast %24 : vector<1x128xf32> to vector<256x128xf32>
    %26 = arith.addf %22, %25 : vector<256x128xf32>
    %cst_19 = arith.constant 0.000000e+00 : f32
    %27 = vector.broadcast %cst_19 : f32 to vector<256x128xf32>
    %28 = arith.maximumf %26, %27 : vector<256x128xf32>
    %29 = arith.truncf %28 : vector<256x128xf32> to vector<256x128xbf16>
    %c2 = arith.constant 2 : index
    %c0_20 = arith.constant 0 : index
    %c0_21 = arith.constant 0 : index
    %30 = vector.load %arg4[%c2, %c0_20, %c0_21] : memref<3x128x128xbf16, #tpu.memory_space<vmem>>, vector<1x128x128xbf16>
    %31 = vector.shape_cast %30 : vector<1x128x128xbf16> to vector<128x128xbf16>
    %cst_22 = arith.constant dense<0.000000e+00> : vector<256x128xf32>
    %32 = tpu.matmul %29, %31, %cst_22 {dimension_numbers = #tpu.dot_dimension_numbers<[1], [0], [0], [1], [0, 0, 1, 1], [], []>} : vector<256x128xbf16>, vector<128x128xbf16>, vector<256x128xf32> -> vector<256x128xf32>
    %c2_23 = arith.constant 2 : index
    %c0_24 = arith.constant 0 : index
    %c0_25 = arith.constant 0 : index
    %33 = vector.load %arg5[%c2_23, %c0_24, %c0_25] : memref<3x1x128xf32, #tpu.memory_space<vmem>>, vector<1x1x128xf32>
    %34 = vector.shape_cast %33 : vector<1x1x128xf32> to vector<1x128xf32>
    %35 = vector.broadcast %34 : vector<1x128xf32> to vector<256x128xf32>
    %36 = arith.addf %32, %35 : vector<256x128xf32>
    %cst_26 = arith.constant 0.000000e+00 : f32
    %37 = vector.broadcast %cst_26 : f32 to vector<256x128xf32>
    %38 = arith.maximumf %36, %37 : vector<256x128xf32>
    %39 = arith.truncf %38 : vector<256x128xf32> to vector<256x128xbf16>
    %c0_27 = arith.constant 0 : index
    %c0_28 = arith.constant 0 : index
    %40 = vector.load %arg6[%c0_27, %c0_28] : memref<128x129xbf16, #tpu.memory_space<vmem>>, vector<128x129xbf16>
    %cst_29 = arith.constant dense<0.000000e+00> : vector<256x129xf32>
    %41 = tpu.matmul %39, %40, %cst_29 {dimension_numbers = #tpu.dot_dimension_numbers<[1], [0], [0], [1], [0, 0, 1, 1], [], []>} : vector<256x128xbf16>, vector<128x129xbf16>, vector<256x129xf32> -> vector<256x129xf32>
    %c0_30 = arith.constant 0 : index
    %c0_31 = arith.constant 0 : index
    %42 = vector.load %arg7[%c0_30, %c0_31] : memref<1x129xf32, #tpu.memory_space<vmem>>, vector<1x129xf32>
    %43 = vector.broadcast %42 : vector<1x129xf32> to vector<256x129xf32>
    %44 = arith.addf %41, %43 : vector<256x129xf32>
    %45 = vector.extract_strided_slice %44 {offsets = [0, 0], sizes = [256, 128], strides = [1, 1]} : vector<256x129xf32> to vector<256x128xf32>
    %cst_32 = arith.constant 0.000000e+00 : f32
    %46 = vector.broadcast %cst_32 : f32 to vector<256x128xf32>
    %47 = arith.maximumf %45, %46 : vector<256x128xf32>
    %48 = arith.truncf %47 : vector<256x128xf32> to vector<256x128xbf16>
    %49 = vector.extract_strided_slice %44 {offsets = [0, 128], sizes = [256, 1], strides = [1, 1]} : vector<256x129xf32> to vector<256x1xf32>
    %c0_33 = arith.constant 0 : index
    %c0_34 = arith.constant 0 : index
    %50 = vector.load %arg8[%c0_33, %c0_34] : memref<128x64xbf16, #tpu.memory_space<vmem>>, vector<128x64xbf16>
    %cst_35 = arith.constant dense<0.000000e+00> : vector<256x64xf32>
    %51 = tpu.matmul %48, %50, %cst_35 {dimension_numbers = #tpu.dot_dimension_numbers<[1], [0], [0], [1], [0, 0, 1, 1], [], []>} : vector<256x128xbf16>, vector<128x64xbf16>, vector<256x64xf32> -> vector<256x64xf32>
    %52 = arith.addf %51, %9 : vector<256x64xf32>
    %cst_36 = arith.constant 0.000000e+00 : f32
    %53 = vector.broadcast %cst_36 : f32 to vector<256x64xf32>
    %54 = arith.maximumf %52, %53 : vector<256x64xf32>
    %55 = arith.truncf %54 : vector<256x64xf32> to vector<256x64xbf16>
    %c0_37 = arith.constant 0 : index
    %c0_38 = arith.constant 0 : index
    %56 = vector.load %arg9[%c0_37, %c0_38] : memref<64x4xbf16, #tpu.memory_space<vmem>>, vector<64x4xbf16>
    %cst_39 = arith.constant dense<0.000000e+00> : vector<256x4xf32>
    %57 = tpu.matmul %55, %56, %cst_39 {dimension_numbers = #tpu.dot_dimension_numbers<[1], [0], [0], [1], [0, 0, 1, 1], [], []>} : vector<256x64xbf16>, vector<64x4xbf16>, vector<256x4xf32> -> vector<256x4xf32>
    %c0_40 = arith.constant 0 : index
    %c0_41 = arith.constant 0 : index
    %58 = vector.load %arg10[%c0_40, %c0_41] : memref<1x4xf32, #tpu.memory_space<vmem>>, vector<1x4xf32>
    %59 = vector.broadcast %58 : vector<1x4xf32> to vector<256x4xf32>
    %60 = arith.addf %57, %59 : vector<256x4xf32>
    %61 = tpu.iota {dimensions = array<i32: 1>} : vector<1x4xi32>
    %c3_i32 = arith.constant 3 : i32
    %62 = vector.broadcast %c3_i32 : i32 to vector<1x4xi32>
    %63 = arith.cmpi eq, %61, %62 : vector<1x4xi32>
    %cst_42 = arith.constant 0.000000e+00 : f32
    %64 = vector.shape_cast %63 : vector<1x4xi1> to vector<1x4xi1>
    %65 = vector.broadcast %64 : vector<1x4xi1> to vector<256x4xi1>
    %66 = vector.shape_cast %49 : vector<256x1xf32> to vector<256x1xf32>
    %67 = vector.broadcast %66 : vector<256x1xf32> to vector<256x4xf32>
    %68 = vector.broadcast %cst_42 : f32 to vector<256x4xf32>
    %69 = arith.select %65, %67, %68 : vector<256x4xi1>, vector<256x4xf32>
    %70 = arith.addf %60, %69 : vector<256x4xf32>
    %c0_43 = arith.constant 0 : index
    %c0_44 = arith.constant 0 : index
    %71 = vector.load %arg11[%c0_43, %c0_44] : memref<256x4xf32, #tpu.memory_space<vmem>>, vector<256x4xf32>
    tpu.vector_store %arg11[%c0_43, %c0_44], %70 {strides = array<i32>} : memref<256x4xf32, #tpu.memory_space<vmem>>, vector<256x4xf32>,
    return
  }
  func.func @transform_0(%arg0: i32) -> (i32, i32) {
    %c0_i32 = arith.constant 0 : i32
    %c0_i32_0 = arith.constant 0 : i32
    return %arg0, %c0_i32 : i32, i32
  }
  func.func @transform_1(%arg0: i32) -> (i32, i32) {
    %c0_i32 = arith.constant 0 : i32
    %c0_i32_0 = arith.constant 0 : i32
    %c0_i32_1 = arith.constant 0 : i32
    return %c0_i32, %c0_i32_0 : i32, i32
  }
  func.func @transform_2(%arg0: i32) -> (i32, i32) {
    %c0_i32 = arith.constant 0 : i32
    %c0_i32_0 = arith.constant 0 : i32
    %c0_i32_1 = arith.constant 0 : i32
    return %c0_i32, %c0_i32_0 : i32, i32
  }
  func.func @transform_3(%arg0: i32) -> (i32, i32, i32) {
    %c0_i32 = arith.constant 0 : i32
    %c0_i32_0 = arith.constant 0 : i32
    %c0_i32_1 = arith.constant 0 : i32
    %c0_i32_2 = arith.constant 0 : i32
    return %c0_i32, %c0_i32_0, %c0_i32_1 : i32, i32, i32
  }
  func.func @transform_4(%arg0: i32) -> (i32, i32, i32) {
    %c0_i32 = arith.constant 0 : i32
    %c0_i32_0 = arith.constant 0 : i32
    %c0_i32_1 = arith.constant 0 : i32
    %c0_i32_2 = arith.constant 0 : i32
    return %c0_i32, %c0_i32_0, %c0_i32_1 : i32, i32, i32
  }
  func.func @transform_5(%arg0: i32) -> (i32, i32) {
    %c0_i32 = arith.constant 0 : i32
    %c0_i32_0 = arith.constant 0 : i32
    %c0_i32_1 = arith.constant 0 : i32
    return %c0_i32, %c0_i32_0 : i32, i32
  }
  func.func @transform_6(%arg0: i32) -> (i32, i32) {
    %c0_i32 = arith.constant 0 : i32
    %c0_i32_0 = arith.constant 0 : i32
    %c0_i32_1 = arith.constant 0 : i32
    return %c0_i32, %c0_i32_0 : i32, i32
  }
  func.func @transform_7(%arg0: i32) -> (i32, i32) {
    %c0_i32 = arith.constant 0 : i32
    %c0_i32_0 = arith.constant 0 : i32
    %c0_i32_1 = arith.constant 0 : i32
    return %c0_i32, %c0_i32_0 : i32, i32
  }
  func.func @transform_8(%arg0: i32) -> (i32, i32) {
    %c0_i32 = arith.constant 0 : i32
    %c0_i32_0 = arith.constant 0 : i32
    %c0_i32_1 = arith.constant 0 : i32
    return %c0_i32, %c0_i32_0 : i32, i32
  }
  func.func @transform_9(%arg0: i32) -> (i32, i32) {
    %c0_i32 = arith.constant 0 : i32
    %c0_i32_0 = arith.constant 0 : i32
    %c0_i32_1 = arith.constant 0 : i32
    return %c0_i32, %c0_i32_0 : i32, i32
  }
  func.func @transform_10(%arg0: i32) -> (i32, i32) {
    %c0_i32 = arith.constant 0 : i32
    %c0_i32_0 = arith.constant 0 : i32
    return %arg0, %c0_i32 : i32, i32
  }
}

</mosaic_0001>

<llo_original>
// kernel: tpu_custom_call.1
$region0: #{tpu_custom_call.1}
  #allocation0 [shape = 'u32[]', space=smem, size = 0x4, offset = 0x4, fixed_abs, tag = 'smem constant byte address 0x4 - core index']
  #allocation1 [shape = 'u32[144,128]{1,0:T(1,128)}', space=vmem, size = 0x12000, scoped, tag = 'internal scratch']
  %s0 = inlined_call_operand.vmem [shape: f32[512,66], index: 0, kind: input, shape index: {}]
  %s1 = inlined_call_operand.vmem [shape: bf16[66,192], index: 1, kind: input, shape index: {}]
  %s2 = inlined_call_operand.vmem [shape: f32[1,192], index: 2, kind: input, shape index: {}]
  %s3 = inlined_call_operand.vmem [shape: bf16[3,128,128], index: 3, kind: input, shape index: {}]
  %s4 = inlined_call_operand.vmem [shape: f32[3,1,128], index: 4, kind: input, shape index: {}]
  %s5 = inlined_call_operand.vmem [shape: bf16[128,129], index: 5, kind: input, shape index: {}]
  %s6 = inlined_call_operand.vmem [shape: f32[1,129], index: 6, kind: input, shape index: {}]
  %s7 = inlined_call_operand.vmem [shape: bf16[128,64], index: 7, kind: input, shape index: {}]
  %s8 = inlined_call_operand.vmem [shape: bf16[64,4], index: 8, kind: input, shape index: {}]
  %s9 = inlined_call_operand.vmem [shape: f32[1,4], index: 9, kind: input, shape index: {}]
  %s10 = inlined_call_operand.vmem [shape: f32[512,4], index: 10, kind: output, shape index: {}]
  %s11 = sld [smem:[#allocation0]]
  $region73: #{tpu_custom_call.1} parent=0
    _
  %s13 = ssub.s32 1, %s11
  %s14 = scalar_select 0, %s13, %s11
  loop: start=0, step=1, limit=4
  $region2: #{tpu_custom_call.1} parent=0 // loop_pre_header
    _
  $region3: #{tpu_custom_call.1} parent=0 // loop_header
    %s16 = sphi 0, %s20
    %p17 = scmp.ge.s32.totalorder %s16, 4
    %s26 = sphi 0, %s28
    %s29 = sphi 0, %s26
    %s30 = sphi 0, %s29
    %s46 = sphi 0, %s30
    %s50 = sphi 0, %s50
    %s52 = sphi 0, %s50
    %s53 = sphi 0, %s52
    %s67 = sphi 0, %s53
    %s71 = sphi 0, %s71
    %s73 = sphi 0, %s71
    %s74 = sphi 0, %s73
    %s88 = sphi 0, %s74
    %s92 = sphi 0, %s92
    %s94 = sphi 0, %s92
    %s95 = sphi 0, %s94
    %s109 = sphi 0, %s95
    %s113 = sphi 0, %s113
    %s115 = sphi 0, %s113
    %s116 = sphi 0, %s115
    %s130 = sphi 0, %s116
    %s134 = sphi 0, %s134
    %s136 = sphi 0, %s134
    %s137 = sphi 0, %s136
    %s151 = sphi 0, %s137
    %s155 = sphi 0, %s155
    %s157 = sphi 0, %s155
    %s158 = sphi 0, %s157
    %s172 = sphi 0, %s158
    %s176 = sphi 0, %s176
    %s178 = sphi 0, %s176
    %s179 = sphi 0, %s178
    %s193 = sphi 0, %s179
    %s197 = sphi 0, %s197
    %s199 = sphi 0, %s197
    %s200 = sphi 0, %s199
    %s214 = sphi 0, %s200
    %s218 = sphi 0, %s218
    %s220 = sphi 0, %s218
    %s221 = sphi 0, %s220
    %s235 = sphi 0, %s221
    %s241 = sphi 0, %s243
    %s244 = sphi 0, %s241
    %s245 = sphi 0, %s244
    %s261 = sphi 0, %s245
  $region4: #{tpu_custom_call.1} parent=0 // loop_header_branch
    %19 = sbr.rel (%p17) target = $region8
  $region5: #{tpu_custom_call.1} parent=0 // loop_body
    %s21 = ssub.s32 %s16, 1
    %s22 = ssub.s32 %s16, 2
    %s23 = sadd.s32 %s16, 1
    %s24 = ssub.s32 %s16, %s23
    %p25 = scmp.eq.s32.totalorder %s24, 0
    %s27 = sadd.s32 %s26, 1
    %s28 = scalar_select %p25, %s26, %s27
    %p31 = pneg %p25
    %p32 = scmp.eq.s32.totalorder %s16, 1
    %p33 = por %p31, %p32
    %p34 = scmp.ne.s32.totalorder %s26, %s29
    %p35 = scmp.eq.s32.totalorder %s16, 0
    %p36 = por %p34, %p35
    %p37 = scmp.ne.s32.totalorder %s26, %s29
    %p38 = scmp.eq.s32.totalorder %s21, 1
    %p39 = por %p37, %p38
    %p40 = scmp.ne.s32.totalorder %s29, %s30
    %p41 = scmp.eq.s32.totalorder %s21, 0
    %p42 = por %p40, %p41
    %p43 = scmp.ne.s32.totalorder %s29, %s30
    %p44 = scmp.eq.s32.totalorder %s22, 1
    %p45 = por %p43, %p44
    %p47 = scmp.ne.s32.totalorder %s30, %s46
    %p48 = scmp.eq.s32.totalorder %s22, 0
    %p49 = por %p47, %p48
    %s51 = sadd.s32 %s50, 1
    %p54 = scmp.eq.s32.totalorder %s16, 1
    %p55 = scmp.ne.s32.totalorder %s50, %s52
    %p56 = scmp.eq.s32.totalorder %s16, 0
    %p57 = por %p55, %p56
    %p58 = scmp.ne.s32.totalorder %s50, %s52
    %p59 = scmp.eq.s32.totalorder %s21, 1
    %p60 = por %p58, %p59
    %p61 = scmp.ne.s32.totalorder %s52, %s53
    %p62 = scmp.eq.s32.totalorder %s21, 0
    %p63 = por %p61, %p62
    %p64 = scmp.ne.s32.totalorder %s52, %s53
    %p65 = scmp.eq.s32.totalorder %s22, 1
    %p66 = por %p64, %p65
    %p68 = scmp.ne.s32.totalorder %s53, %s67
    %p69 = scmp.eq.s32.totalorder %s22, 0
    %p70 = por %p68, %p69
    %s72 = sadd.s32 %s71, 1
    %p75 = scmp.eq.s32.totalorder %s16, 1
    %p76 = scmp.ne.s32.totalorder %s71, %s73
    %p77 = scmp.eq.s32.totalorder %s16, 0
    %p78 = por %p76, %p77
    %p79 = scmp.ne.s32.totalorder %s71, %s73
    %p80 = scmp.eq.s32.totalorder %s21, 1
    %p81 = por %p79, %p80
    %p82 = scmp.ne.s32.totalorder %s73, %s74
    %p83 = scmp.eq.s32.totalorder %s21, 0
    %p84 = por %p82, %p83
    %p85 = scmp.ne.s32.totalorder %s73, %s74
    %p86 = scmp.eq.s32.totalorder %s22, 1
    %p87 = por %p85, %p86
    %p89 = scmp.ne.s32.totalorder %s74, %s88
    %p90 = scmp.eq.s32.totalorder %s22, 0
    %p91 = por %p89, %p90
    %s93 = sadd.s32 %s92, 1
    %p96 = scmp.eq.s32.totalorder %s16, 1
    %p97 = scmp.ne.s32.totalorder %s92, %s94
    %p98 = scmp.eq.s32.totalorder %s16, 0
    %p99 = por %p97, %p98
    %p100 = scmp.ne.s32.totalorder %s92, %s94
    %p101 = scmp.eq.s32.totalorder %s21, 1
    %p102 = por %p100, %p101
    %p103 = scmp.ne.s32.totalorder %s94, %s95
    %p104 = scmp.eq.s32.totalorder %s21, 0
    %p105 = por %p103, %p104
    %p106 = scmp.ne.s32.totalorder %s94, %s95
    %p107 = scmp.eq.s32.totalorder %s22, 1
    %p108 = por %p106, %p107
    %p110 = scmp.ne.s32.totalorder %s95, %s109
    %p111 = scmp.eq.s32.totalorder %s22, 0
    %p112 = por %p110, %p111
    %s114 = sadd.s32 %s113, 1
    %p117 = scmp.eq.s32.totalorder %s16, 1
    %p118 = scmp.ne.s32.totalorder %s113, %s115
    %p119 = scmp.eq.s32.totalorder %s16, 0
    %p120 = por %p118, %p119
    %p121 = scmp.ne.s32.totalorder %s113, %s115
    %p122 = scmp.eq.s32.totalorder %s21, 1
    %p123 = por %p121, %p122
    %p124 = scmp.ne.s32.totalorder %s115, %s116
    %p125 = scmp.eq.s32.totalorder %s21, 0
    %p126 = por %p124, %p125
    %p127 = scmp.ne.s32.totalorder %s115, %s116
    %p128 = scmp.eq.s32.totalorder %s22, 1
    %p129 = por %p127, %p128
    %p131 = scmp.ne.s32.totalorder %s116, %s130
    %p132 = scmp.eq.s32.totalorder %s22, 0
    %p133 = por %p131, %p132
    %s135 = sadd.s32 %s134, 1
    %p138 = scmp.eq.s32.totalorder %s16, 1
    %p139 = scmp.ne.s32.totalorder %s134, %s136
    %p140 = scmp.eq.s32.totalorder %s16, 0
    %p141 = por %p139, %p140
    %p142 = scmp.ne.s32.totalorder %s134, %s136
    %p143 = scmp.eq.s32.totalorder %s21, 1
    %p144 = por %p142, %p143
    %p145 = scmp.ne.s32.totalorder %s136, %s137
    %p146 = scmp.eq.s32.totalorder %s21, 0
    %p147 = por %p145, %p146
    %p148 = scmp.ne.s32.totalorder %s136, %s137
    %p149 = scmp.eq.s32.totalorder %s22, 1
    %p150 = por %p148, %p149
    %p152 = scmp.ne.s32.totalorder %s137, %s151
    %p153 = scmp.eq.s32.totalorder %s22, 0
    %p154 = por %p152, %p153
    %s156 = sadd.s32 %s155, 1
    %p159 = scmp.eq.s32.totalorder %s16, 1
    %p160 = scmp.ne.s32.totalorder %s155, %s157
    %p161 = scmp.eq.s32.totalorder %s16, 0
    %p162 = por %p160, %p161
    %p163 = scmp.ne.s32.totalorder %s155, %s157
    %p164 = scmp.eq.s32.totalorder %s21, 1
    %p165 = por %p163, %p164
    %p166 = scmp.ne.s32.totalorder %s157, %s158
    %p167 = scmp.eq.s32.totalorder %s21, 0
    %p168 = por %p166, %p167
    %p169 = scmp.ne.s32.totalorder %s157, %s158
    %p170 = scmp.eq.s32.totalorder %s22, 1
    %p171 = por %p169, %p170
    %p173 = scmp.ne.s32.totalorder %s158, %s172
    %p174 = scmp.eq.s32.totalorder %s22, 0
    %p175 = por %p173, %p174
    %s177 = sadd.s32 %s176, 1
    %p180 = scmp.eq.s32.totalorder %s16, 1
    %p181 = scmp.ne.s32.totalorder %s176, %s178
    %p182 = scmp.eq.s32.totalorder %s16, 0
    %p183 = por %p181, %p182
    %p184 = scmp.ne.s32.totalorder %s176, %s178
    %p185 = scmp.eq.s32.totalorder %s21, 1
    %p186 = por %p184, %p185
    %p187 = scmp.ne.s32.totalorder %s178, %s179
    %p188 = scmp.eq.s32.totalorder %s21, 0
    %p189 = por %p187, %p188
    %p190 = scmp.ne.s32.totalorder %s178, %s179
    %p191 = scmp.eq.s32.totalorder %s22, 1
    %p192 = por %p190, %p191
    %p194 = scmp.ne.s32.totalorder %s179, %s193
    %p195 = scmp.eq.s32.totalorder %s22, 0
    %p196 = por %p194, %p195
    %s198 = sadd.s32 %s197, 1
    %p201 = scmp.eq.s32.totalorder %s16, 1
    %p202 = scmp.ne.s32.totalorder %s197, %s199
    %p203 = scmp.eq.s32.totalorder %s16, 0
    %p204 = por %p202, %p203
    %p205 = scmp.ne.s32.totalorder %s197, %s199
    %p206 = scmp.eq.s32.totalorder %s21, 1
    %p207 = por %p205, %p206
    %p208 = scmp.ne.s32.totalorder %s199, %s200
    %p209 = scmp.eq.s32.totalorder %s21, 0
    %p210 = por %p208, %p209
    %p211 = scmp.ne.s32.totalorder %s199, %s200
    %p212 = scmp.eq.s32.totalorder %s22, 1
    %p213 = por %p211, %p212
    %p215 = scmp.ne.s32.totalorder %s200, %s214
    %p216 = scmp.eq.s32.totalorder %s22, 0
    %p217 = por %p215, %p216
    %s219 = sadd.s32 %s218, 1
    %p222 = scmp.eq.s32.totalorder %s16, 1
    %p223 = scmp.ne.s32.totalorder %s218, %s220
    %p224 = scmp.eq.s32.totalorder %s16, 0
    %p225 = por %p223, %p224
    %p226 = scmp.ne.s32.totalorder %s218, %s220
    %p227 = scmp.eq.s32.totalorder %s21, 1
    %p228 = por %p226, %p227
    %p229 = scmp.ne.s32.totalorder %s220, %s221
    %p230 = scmp.eq.s32.totalorder %s21, 0
    %p231 = por %p229, %p230
    %p232 = scmp.ne.s32.totalorder %s220, %s221
    %p233 = scmp.eq.s32.totalorder %s22, 1
    %p234 = por %p232, %p233
    %p236 = scmp.ne.s32.totalorder %s221, %s235
    %p237 = scmp.eq.s32.totalorder %s22, 0
    %p238 = por %p236, %p237
    %s239 = ssub.s32 %s16, %s23
    %p240 = scmp.eq.s32.totalorder %s239, 0
    %s242 = sadd.s32 %s241, 1
    %s243 = scalar_select %p240, %s241, %s242
    %p246 = pneg %p240
    %p247 = scmp.eq.s32.totalorder %s16, 1
    %p248 = por %p246, %p247
    %p249 = scmp.ne.s32.totalorder %s241, %s244
    %p250 = scmp.eq.s32.totalorder %s16, 0
    %p251 = por %p249, %p250
    %p252 = scmp.ne.s32.totalorder %s241, %s244
    %p253 = scmp.eq.s32.totalorder %s21, 1
    %p254 = por %p252, %p253
    %p255 = scmp.ne.s32.totalorder %s244, %s245
    %p256 = scmp.eq.s32.totalorder %s21, 0
    %p257 = por %p255, %p256
    %p258 = scmp.ne.s32.totalorder %s244, %s245
    %p259 = scmp.eq.s32.totalorder %s22, 1
    %p260 = por %p258, %p259
    %p262 = scmp.ne.s32.totalorder %s245, %s261
    %p263 = scmp.eq.s32.totalorder %s22, 0
    %p264 = por %p262, %p263
    %p265 = scmp.le.s32.totalorder 1, %s16
    %p266 = scmp.lt.s32.totalorder %s16, 3
    %p267 = pnand %p265, %p266
    %p268 = pneg %p267
    // Predicated region
    $region9: #{tpu_custom_call.1} parent=5 // pred_check
      _
    $region10: #{tpu_custom_call.1} parent=5 // pred_check_branch
      %270 = sbr.rel (%p267) target = $region12
    $region11: #{tpu_custom_call.1} parent=5 // pred_region
      %s271 = ssub.s32 %s16, 1
      // Predicated region
      $region13: #{tpu_custom_call.1} parent=11 // pred_check
        %p272 = pneg %p63
      $region14: #{tpu_custom_call.1} parent=11 // pred_check_branch
        %274 = sbr.rel (%p272) target = $region16
      $region15: #{tpu_custom_call.1} parent=11 // pred_region
        _
      $region16: #{tpu_custom_call.1} parent=11 // pred_fallthru
        _
      // Predicated region
      $region17: #{tpu_custom_call.1} parent=11 // pred_check
        %p275 = pneg %p84
      $region18: #{tpu_custom_call.1} parent=11 // pred_check_branch
        %277 = sbr.rel (%p275) target = $region20
      $region19: #{tpu_custom_call.1} parent=11 // pred_region
        _
      $region20: #{tpu_custom_call.1} parent=11 // pred_fallthru
        _
      // Predicated region
      $region21: #{tpu_custom_call.1} parent=11 // pred_check
        %p278 = pneg %p105
      $region22: #{tpu_custom_call.1} parent=11 // pred_check_branch
        %280 = sbr.rel (%p278) target = $region24
      $region23: #{tpu_custom_call.1} parent=11 // pred_region
        _
      $region24: #{tpu_custom_call.1} parent=11 // pred_fallthru
        _
      // Predicated region
      $region25: #{tpu_custom_call.1} parent=11 // pred_check
        %p281 = pneg %p126
      $region26: #{tpu_custom_call.1} parent=11 // pred_check_branch
        %283 = sbr.rel (%p281) target = $region28
      $region27: #{tpu_custom_call.1} parent=11 // pred_region
        _
      $region28: #{tpu_custom_call.1} parent=11 // pred_fallthru
        _
      // Predicated region
      $region29: #{tpu_custom_call.1} parent=11 // pred_check
        %p284 = pneg %p147
      $region30: #{tpu_custom_call.1} parent=11 // pred_check_branch
        %286 = sbr.rel (%p284) target = $region32
      $region31: #{tpu_custom_call.1} parent=11 // pred_region
        _
      $region32: #{tpu_custom_call.1} parent=11 // pred_fallthru
        _
      // Predicated region
      $region33: #{tpu_custom_call.1} parent=11 // pred_check
        %p287 = pneg %p168
      $region34: #{tpu_custom_call.1} parent=11 // pred_check_branch
        %289 = sbr.rel (%p287) target = $region36
      $region35: #{tpu_custom_call.1} parent=11 // pred_region
        _
      $region36: #{tpu_custom_call.1} parent=11 // pred_fallthru
        _
      // Predicated region
      $region37: #{tpu_custom_call.1} parent=11 // pred_check
        %p290 = pneg %p189
      $region38: #{tpu_custom_call.1} parent=11 // pred_check_branch
        %292 = sbr.rel (%p290) target = $region40
      $region39: #{tpu_custom_call.1} parent=11 // pred_region
        _
      $region40: #{tpu_custom_call.1} parent=11 // pred_fallthru
        _
      // Predicated region
      $region41: #{tpu_custom_call.1} parent=11 // pred_check
        %p293 = pneg %p210
      $region42: #{tpu_custom_call.1} parent=11 // pred_check_branch
        %295 = sbr.rel (%p293) target = $region44
      $region43: #{tpu_custom_call.1} parent=11 // pred_region
        _
      $region44: #{tpu_custom_call.1} parent=11 // pred_fallthru
        _
      // Predicated region
      $region45: #{tpu_custom_call.1} parent=11 // pred_check
        %p296 = pneg %p231
      $region46: #{tpu_custom_call.1} parent=11 // pred_check_branch
        %298 = sbr.rel (%p296) target = $region48
      $region47: #{tpu_custom_call.1} parent=11 // pred_region
        _
      $region48: #{tpu_custom_call.1} parent=11 // pred_fallthru
        _
    $region12: #{tpu_custom_call.1} parent=5 // pred_fallthru
      _
    %p299 = scmp.lt.s32.totalorder %s16, 2
    // Predicated region
    $region49: #{tpu_custom_call.1} parent=5 // pred_check
      %p300 = pneg %p299
    $region50: #{tpu_custom_call.1} parent=5 // pred_check_branch
      %302 = sbr.rel (%p300) target = $region52
    $region51: #{tpu_custom_call.1} parent=5 // pred_region
      // Predicated region
      $region53: #{tpu_custom_call.1} parent=51 // pred_check
        %p303 = pneg %p36
      $region54: #{tpu_custom_call.1} parent=51 // pred_check_branch
        %305 = sbr.rel (%p303) target = $region56
      $region55: #{tpu_custom_call.1} parent=51 // pred_region
        %s306 = smul.u32 32, %s16
        %p307 = scmp.lt.s32.totalorder %s306, 63
        %s308 = scalar_select %p307, %s306, 63
        %s309 = smul.addr %s308, 8
        %s310 = scalar_lea.vmem %s0, %s309
        %s311 = smul.u32 32, %s16
      $region56: #{tpu_custom_call.1} parent=51 // pred_fallthru
        _
    $region52: #{tpu_custom_call.1} parent=5 // pred_fallthru
      _
    %p312 = scmp.le.s32.totalorder 1, %s16
    %p313 = scmp.lt.s32.totalorder %s16, 3
    %p314 = pnand %p312, %p313
    %p315 = pneg %p314
    // Predicated region
    $region57: #{tpu_custom_call.1} parent=5 // pred_check
      _
    $region58: #{tpu_custom_call.1} parent=5 // pred_check_branch
      %317 = sbr.rel (%p314) target = $region60
    $region59: #{tpu_custom_call.1} parent=5 // pred_region
      %s318 = ssub.s32 %s16, 1
      %s319 = smul.u32 32, %s21
      %p320 = scmp.lt.s32.totalorder %s319, 63
      %s321 = scalar_select %p320, %s319, 63
      %s322 = smul.addr %s321, 8
      %s323 = scalar_lea.vmem %s0, %s322
      %p324 = pneg %p42
      %p325 = pneg %p39
      %p326 = pneg %p63
      %p327 = pneg %p60
      %p328 = pneg %p84
      %p329 = pneg %p81
      %p330 = pneg %p105
      %p331 = pneg %p102
      %p332 = pneg %p126
      %p333 = pneg %p123
      %p334 = pneg %p147
      %p335 = pneg %p144
      %p336 = pneg %p168
      %p337 = pneg %p165
      %p338 = pneg %p189
      %p339 = pneg %p186
      %p340 = pneg %p210
      %p341 = pneg %p207
      %p342 = pneg %p231
      %p343 = pneg %p228
      %p344 = pneg %p257
      %p345 = pneg %p254
      %s346 = smul.u32 32, %s21
      %p347 = scmp.lt.s32.totalorder %s346, 63
      %s348 = scalar_select %p347, %s346, 63
      %s349 = smul.addr %s348, 8
      %s350 = scalar_lea.vmem %s10, %s349
      %s351 = smul.u32 32, %s21
      %p352 = scmp.lt.s32.totalorder %s351, 63
      %s353 = scalar_select %p352, %s351, 63
      %s354 = smul.addr %s353, 8
      %s355 = scalar_lea.vmem %s0, %s354
      %s356 = smul.u32 32, %s21
      %s357 = smul.u32 32, %s21
      %p358 = scmp.lt.s32.totalorder %s357, 63
      %s359 = scalar_select %p358, %s357, 63
      %s360 = smul.addr %s359, 8
      %s361 = scalar_lea.vmem %s10, %s360
      %s362 = smul.u32 32, %s21
      %v364 = vld [vmem:[%s355] sm:$0xff]
      %v365 = vld [vmem:[%s355 + $0x8] sm:$0xff]
      %v366 = vld [vmem:[%s355 + $0x10] sm:$0xff]
      %v367 = vld [vmem:[%s355 + $0x18] sm:$0xff]
      %v368 = vld [vmem:[%s355 + $0x20] sm:$0xff]
      %v369 = vld [vmem:[%s355 + $0x28] sm:$0xff]
      %v370 = vld [vmem:[%s355 + $0x30] sm:$0xff]
      %v371 = vld [vmem:[%s355 + $0x38] sm:$0xff]
      %v372 = vld [vmem:[%s355 + $0x40] sm:$0xff]
      %v373 = vld [vmem:[%s355 + $0x48] sm:$0xff]
      %v374 = vld [vmem:[%s355 + $0x50] sm:$0xff]
      %v375 = vld [vmem:[%s355 + $0x58] sm:$0xff]
      %v376 = vld [vmem:[%s355 + $0x60] sm:$0xff]
      %v377 = vld [vmem:[%s355 + $0x68] sm:$0xff]
      %v378 = vld [vmem:[%s355 + $0x70] sm:$0xff]
      %v379 = vld [vmem:[%s355 + $0x78] sm:$0xff]
      %v380 = vld [vmem:[%s355 + $0x80] sm:$0xff]
      %v381 = vld [vmem:[%s355 + $0x88] sm:$0xff]
      %v382 = vld [vmem:[%s355 + $0x90] sm:$0xff]
      %v383 = vld [vmem:[%s355 + $0x98] sm:$0xff]
      %v384 = vld [vmem:[%s355 + $0xa0] sm:$0xff]
      %v385 = vld [vmem:[%s355 + $0xa8] sm:$0xff]
      %v386 = vld [vmem:[%s355 + $0xb0] sm:$0xff]
      %v387 = vld [vmem:[%s355 + $0xb8] sm:$0xff]
      %v388 = vld [vmem:[%s355 + $0xc0] sm:$0xff]
      %v389 = vld [vmem:[%s355 + $0xc8] sm:$0xff]
      %v390 = vld [vmem:[%s355 + $0xd0] sm:$0xff]
      %v391 = vld [vmem:[%s355 + $0xd8] sm:$0xff]
      %v392 = vld [vmem:[%s355 + $0xe0] sm:$0xff]
      %v393 = vld [vmem:[%s355 + $0xe8] sm:$0xff]
      %v394 = vld [vmem:[%s355 + $0xf0] sm:$0xff]
      %v395 = vld [vmem:[%s355 + $0xf8] sm:$0xff]
      %v396 = vpack.c.bf16 %v365, %v364
      %v397 = vpack.c.bf16 %v367, %v366
      %v398 = vpack.c.bf16 %v369, %v368
      %v399 = vpack.c.bf16 %v371, %v370
      %v400 = vpack.c.bf16 %v373, %v372
      %v401 = vpack.c.bf16 %v375, %v374
      %v402 = vpack.c.bf16 %v377, %v376
      %v403 = vpack.c.bf16 %v379, %v378
      %v404 = vpack.c.bf16 %v381, %v380
      %v405 = vpack.c.bf16 %v383, %v382
      %v406 = vpack.c.bf16 %v385, %v384
      %v407 = vpack.c.bf16 %v387, %v386
      %v408 = vpack.c.bf16 %v389, %v388
      %v409 = vpack.c.bf16 %v391, %v390
      %v410 = vpack.c.bf16 %v393, %v392
      %v411 = vpack.c.bf16 %v395, %v394
      %v412 = vld [vmem:[%s1] sm:$0xff]
      %v413 = vld [vmem:[%s1 + $0x8] sm:$0xff]
      %v414 = vld [vmem:[%s1 + $0x10] sm:$0xff]
      %v415 = vld [vmem:[%s1 + $0x18] sm:$0xff]
      %v416 = vld [vmem:[%s1 + $0x20] sm:$0xff]
      %v417 = vld [vmem:[%s1 + $0x28] sm:$0xff]
      %v418 = vld [vmem:[%s1 + $0x30] sm:$0xff]
      %v419 = vld [vmem:[%s1 + $0x38] sm:$0xff]
      %v420 = vld [vmem:[%s1 + $0x40] sm:$0x11]
      %v421 = vld [vmem:[%s2] sm:$0x3]
      %v423 = vlaneseq
      %v424 = vshrl.u32 %v423, 7
      %v425 = vsub.s32 0, %v424
      %v426 = vrot.slane %v421, %v425
      %v427 = vlaneseq
      %v428 = vshrl.u32 %v427, 7
      %v429 = vsub.s32 1, %v428
      %v430 = vrot.slane %v421, %v429
      %v442 = vunpack.c.l.b16 %v412
      %v443 = vunpack.c.h.b16 %v412
      %v444 = vunpack.c.l.b16 %v413
      %v445 = vunpack.c.h.b16 %v413
      %v446 = vunpack.c.l.b16 %v414
      %v447 = vunpack.c.h.b16 %v414
      %v448 = vunpack.c.l.b16 %v415
      %v449 = vunpack.c.h.b16 %v415
      %v450 = vunpack.c.l.b16 %v416
      %v451 = vunpack.c.h.b16 %v416
      %v452 = vunpack.c.l.b16 %v417
      %v453 = vunpack.c.h.b16 %v417
      %v454 = vunpack.c.l.b16 %v418
      %v455 = vunpack.c.h.b16 %v418
      %v456 = vunpack.c.l.b16 %v419
      %v457 = vunpack.c.h.b16 %v419
      %v458 = vunpack.c.l.b16 %v420
      %v459 = vunpack.c.h.b16 %v420
      %v460 = vpack.c.b16 %v444, %v442
      %v461 = vpack.c.b16 %v445, %v443
      %v462 = vpack.c.b16 %v448, %v446
      %v463 = vpack.c.b16 %v449, %v447
      %v464 = vpack.c.b16 %v452, %v450
      %v465 = vpack.c.b16 %v453, %v451
      %v466 = vpack.c.b16 %v456, %v454
      %v467 = vpack.c.b16 %v457, %v455
      %v468 = vpack.c.b16 %v458, %v458
      %v469 = vpack.c.b16 %v459, %v459
      %vm478 = vcmask 539648
      %v480 = vsel %vm478, %v396, 0
      %v483 = vsel %vm478, %v397, 0
      %v486 = vsel %vm478, %v398, 0
      %v489 = vsel %vm478, %v399, 0
      %v492 = vsel %vm478, %v400, 0
      %v495 = vsel %vm478, %v401, 0
      %v498 = vsel %vm478, %v402, 0
      %v501 = vsel %vm478, %v403, 0
      %v504 = vsel %vm478, %v404, 0
      %v507 = vsel %vm478, %v405, 0
      %v510 = vsel %vm478, %v406, 0
      %v513 = vsel %vm478, %v407, 0
      %v516 = vsel %vm478, %v408, 0
      %v519 = vsel %vm478, %v409, 0
      %v522 = vsel %vm478, %v410, 0
      %v525 = vsel %vm478, %v411, 0
      %vm527 = vcmask 1040384
      %v529 = vsel %vm527, %v468, 0
      %v532 = vsel %vm527, %v469, 0
      %534 = vmatprep.subr.bf16.mxu0 %v461
      %535 = vmatpush1.bf16.msra.mxu0 %v460
      %536 = vmatprep.subr.bf16.mxu0 %v463
      %537 = vmatpush1.bf16.msra.mxu0 %v462
      %538 = vmatprep.subr.bf16.mxu0 %v465
      %539 = vmatpush1.bf16.msra.mxu0 %v464
      %540 = vmatprep.subr.bf16.mxu0 %v467
      %541 = vmatpush1.bf16.msra.mxu0 %v466
      %542 = vmatprep.subr.bf16.mxu0 %v532
      %543 = vmatpush1.bf16.msra.mxu0 %v529
      %544 = vmatprep.subr.bf16.mxu0 0
      %545 = vmatpush1.bf16.msra.mxu0 0
      %546 = vmatprep.subr.bf16.mxu0 0
      %547 = vmatpush1.bf16.msra.mxu0 0
      %548 = vmatprep.subr.bf16.mxu0 0
      %549 = vmatpush1.bf16.msra.mxu0 0
      %550 = vmatprep.subr.bf16.mxu0 0
      %551 = vmatpush1.bf16.msra.mxu0 0
      %552 = vmatprep.subr.bf16.mxu0 0
      %553 = vmatpush1.bf16.msra.mxu0 0
      %554 = vmatprep.subr.bf16.mxu0 0
      %555 = vmatpush1.bf16.msra.mxu0 0
      %556 = vmatprep.subr.bf16.mxu0 0
      %557 = vmatpush1.bf16.msra.mxu0 0
      %558 = vmatprep.subr.bf16.mxu0 0
      %559 = vmatpush1.bf16.msra.mxu0 0
      %560 = vmatprep.subr.bf16.mxu0 0
      %561 = vmatpush1.bf16.msra.mxu0 0
      %562 = vmatprep.subr.bf16.mxu0 0
      %563 = vmatpush1.bf16.msra.mxu0 0
      %564 = vmatprep.subr.bf16.mxu0 0
      %565 = vmatpush1.bf16.msra.mxu0 0
      %566 = vmatprep.mubr.bf16.mxu0 0
      %567 = vmatmul.mubr.bf16.gmra.mrb[0].mxu0 %v480
      %v568 = vpop.f32.mrb[0].mxu0
      %v569 = vadd.f32 %v426, %v568
      %v570 = vpop.f32.mrb[0].mxu0
      %v571 = vadd.f32 %v430, %v570
      %v572 = vpop.f32.mrb[0].mxu0
      %v573 = vadd.f32 %v426, %v572
      %v574 = vpop.f32.mrb[0].mxu0
      %v575 = vadd.f32 %v430, %v574
      %576 = vmatprep.mubr.bf16.mxu0 0
      %577 = vmatmul.mubr.bf16.gmra.mrb[0].mxu0 %v483
      %v578 = vpop.f32.mrb[0].mxu0
      %v579 = vadd.f32 %v426, %v578
      %v580 = vpop.f32.mrb[0].mxu0
      %v581 = vadd.f32 %v430, %v580
      %v582 = vpop.f32.mrb[0].mxu0
      %v583 = vadd.f32 %v426, %v582
      %v584 = vpop.f32.mrb[0].mxu0
      %v585 = vadd.f32 %v430, %v584
      %586 = vmatprep.mubr.bf16.mxu0 0
      %587 = vmatmul.mubr.bf16.gmra.mrb[0].mxu0 %v486
      %v588 = vpop.f32.mrb[0].mxu0
      %v589 = vadd.f32 %v426, %v588
      %v590 = vpop.f32.mrb[0].mxu0
      %v591 = vadd.f32 %v430, %v590
      %v592 = vpop.f32.mrb[0].mxu0
      %v593 = vadd.f32 %v426, %v592
      %v594 = vpop.f32.mrb[0].mxu0
      %v595 = vadd.f32 %v430, %v594
      %596 = vmatprep.mubr.bf16.mxu0 0
      %597 = vmatmul.mubr.bf16.gmra.mrb[0].mxu0 %v489
      %v598 = vpop.f32.mrb[0].mxu0
      %v599 = vadd.f32 %v426, %v598
      %v600 = vpop.f32.mrb[0].mxu0
      %v601 = vadd.f32 %v430, %v600
      %v602 = vpop.f32.mrb[0].mxu0
      %v603 = vadd.f32 %v426, %v602
      %v604 = vpop.f32.mrb[0].mxu0
      %v605 = vadd.f32 %v430, %v604
      %606 = vmatprep.mubr.bf16.mxu0 0
      %607 = vmatmul.mubr.bf16.gmra.mrb[0].mxu0 %v492
      %v608 = vpop.f32.mrb[0].mxu0
      %v609 = vadd.f32 %v426, %v608
      %v610 = vpop.f32.mrb[0].mxu0
      %v611 = vadd.f32 %v430, %v610
      %v612 = vpop.f32.mrb[0].mxu0
      %v613 = vadd.f32 %v426, %v612
      %v614 = vpop.f32.mrb[0].mxu0
      %v615 = vadd.f32 %v430, %v614
      %616 = vmatprep.mubr.bf16.mxu0 0
      %617 = vmatmul.mubr.bf16.gmra.mrb[0].mxu0 %v495
      %v618 = vpop.f32.mrb[0].mxu0
      %v619 = vadd.f32 %v426, %v618
      %v620 = vpop.f32.mrb[0].mxu0
      %v621 = vadd.f32 %v430, %v620
      %v622 = vpop.f32.mrb[0].mxu0
      %v623 = vadd.f32 %v426, %v622
      %v624 = vpop.f32.mrb[0].mxu0
      %v625 = vadd.f32 %v430, %v624
      %626 = vmatprep.mubr.bf16.mxu0 0
      %627 = vmatmul.mubr.bf16.gmra.mrb[0].mxu0 %v498
      %v628 = vpop.f32.mrb[0].mxu0
      %v629 = vadd.f32 %v426, %v628
      %v630 = vpop.f32.mrb[0].mxu0
      %v631 = vadd.f32 %v430, %v630
      %v632 = vpop.f32.mrb[0].mxu0
      %v633 = vadd.f32 %v426, %v632
      %v634 = vpop.f32.mrb[0].mxu0
      %v635 = vadd.f32 %v430, %v634
      %636 = vmatprep.mubr.bf16.mxu0 0
      %637 = vmatmul.mubr.bf16.gmra.mrb[0].mxu0 %v501
      %v638 = vpop.f32.mrb[0].mxu0
      %v639 = vadd.f32 %v426, %v638
      %v640 = vpop.f32.mrb[0].mxu0
      %v641 = vadd.f32 %v430, %v640
      %v642 = vpop.f32.mrb[0].mxu0
      %v643 = vadd.f32 %v426, %v642
      %v644 = vpop.f32.mrb[0].mxu0
      %v645 = vadd.f32 %v430, %v644
      %646 = vmatprep.mubr.bf16.mxu0 0
      %647 = vmatmul.mubr.bf16.gmra.mrb[0].mxu0 %v504
      %v648 = vpop.f32.mrb[0].mxu0
      %v649 = vadd.f32 %v426, %v648
      %v650 = vpop.f32.mrb[0].mxu0
      %v651 = vadd.f32 %v430, %v650
      %v652 = vpop.f32.mrb[0].mxu0
      %v653 = vadd.f32 %v426, %v652
      %v654 = vpop.f32.mrb[0].mxu0
      %v655 = vadd.f32 %v430, %v654
      %656 = vmatprep.mubr.bf16.mxu0 0
      %657 = vmatmul.mubr.bf16.gmra.mrb[0].mxu0 %v507
      %v658 = vpop.f32.mrb[0].mxu0
      %v659 = vadd.f32 %v426, %v658
      %v660 = vpop.f32.mrb[0].mxu0
      %v661 = vadd.f32 %v430, %v660
      %v662 = vpop.f32.mrb[0].mxu0
      %v663 = vadd.f32 %v426, %v662
      %v664 = vpop.f32.mrb[0].mxu0
      %v665 = vadd.f32 %v430, %v664
      %666 = vmatprep.mubr.bf16.mxu0 0
      %667 = vmatmul.mubr.bf16.gmra.mrb[0].mxu0 %v510
      %v668 = vpop.f32.mrb[0].mxu0
      %v669 = vadd.f32 %v426, %v668
      %v670 = vpop.f32.mrb[0].mxu0
      %v671 = vadd.f32 %v430, %v670
      %v672 = vpop.f32.mrb[0].mxu0
      %v673 = vadd.f32 %v426, %v672
      %v674 = vpop.f32.mrb[0].mxu0
      %v675 = vadd.f32 %v430, %v674
      %676 = vmatprep.mubr.bf16.mxu0 0
      %677 = vmatmul.mubr.bf16.gmra.mrb[0].mxu0 %v513
      %v678 = vpop.f32.mrb[0].mxu0
      %v679 = vadd.f32 %v426, %v678
      %v680 = vpop.f32.mrb[0].mxu0
      %v681 = vadd.f32 %v430, %v680
      %v682 = vpop.f32.mrb[0].mxu0
      %v683 = vadd.f32 %v426, %v682
      %v684 = vpop.f32.mrb[0].mxu0
      %v685 = vadd.f32 %v430, %v684
      %686 = vmatprep.mubr.bf16.mxu0 0
      %687 = vmatmul.mubr.bf16.gmra.mrb[0].mxu0 %v516
      %v688 = vpop.f32.mrb[0].mxu0
      %v689 = vadd.f32 %v426, %v688
      %v690 = vpop.f32.mrb[0].mxu0
      %v691 = vadd.f32 %v430, %v690
      %v692 = vpop.f32.mrb[0].mxu0
      %v693 = vadd.f32 %v426, %v692
      %v694 = vpop.f32.mrb[0].mxu0
      %v695 = vadd.f32 %v430, %v694
      %696 = vmatprep.mubr.bf16.mxu0 0
      %697 = vmatmul.mubr.bf16.gmra.mrb[0].mxu0 %v519
      %v698 = vpop.f32.mrb[0].mxu0
      %v699 = vadd.f32 %v426, %v698
      %v700 = vpop.f32.mrb[0].mxu0
      %v701 = vadd.f32 %v430, %v700
      %v702 = vpop.f32.mrb[0].mxu0
      %v703 = vadd.f32 %v426, %v702
      %v704 = vpop.f32.mrb[0].mxu0
      %v705 = vadd.f32 %v430, %v704
      %706 = vmatprep.mubr.bf16.mxu0 0
      %707 = vmatmul.mubr.bf16.gmra.mrb[0].mxu0 %v522
      %v708 = vpop.f32.mrb[0].mxu0
      %v709 = vadd.f32 %v426, %v708
      %v710 = vpop.f32.mrb[0].mxu0
      %v711 = vadd.f32 %v430, %v710
      %v712 = vpop.f32.mrb[0].mxu0
      %v713 = vadd.f32 %v426, %v712
      %v714 = vpop.f32.mrb[0].mxu0
      %v715 = vadd.f32 %v430, %v714
      %716 = vmatprep.mubr.bf16.mxu0 0
      %717 = vmatmul.mubr.bf16.gmra.mrb[0].mxu0 %v525
      %v718 = vpop.f32.mrb[0].mxu0
      %v719 = vadd.f32 %v426, %v718
      %v720 = vpop.f32.mrb[0].mxu0
      %v721 = vadd.f32 %v430, %v720
      %v722 = vpop.f32.mrb[0].mxu0
      %v723 = vadd.f32 %v426, %v722
      %v724 = vpop.f32.mrb[0].mxu0
      %v725 = vadd.f32 %v430, %v724
      %726 = vdwg.mxu0
      %v727 = vpack.c.bf16 %v573, %v569
      %v728 = vpack.c.bf16 %v583, %v579
      %v729 = vpack.c.bf16 %v593, %v589
      %v730 = vpack.c.bf16 %v603, %v599
      %v731 = vpack.c.bf16 %v613, %v609
      %v732 = vpack.c.bf16 %v623, %v619
      %v733 = vpack.c.bf16 %v633, %v629
      %v734 = vpack.c.bf16 %v643, %v639
      %v735 = vpack.c.bf16 %v653, %v649
      %v736 = vpack.c.bf16 %v663, %v659
      %v737 = vpack.c.bf16 %v673, %v669
      %v738 = vpack.c.bf16 %v683, %v679
      %v739 = vpack.c.bf16 %v693, %v689
      %v740 = vpack.c.bf16 %v703, %v699
      %v741 = vpack.c.bf16 %v713, %v709
      %v742 = vpack.c.bf16 %v723, %v719
      %v743 = vld [vmem:[%s3] sm:$0xf]
      %v744 = vld [vmem:[%s3 + $0x4] sm:$0xf]
      %v745 = vld [vmem:[%s3 + $0x8] sm:$0xf]
      %v746 = vld [vmem:[%s3 + $0xc] sm:$0xf]
      %v747 = vld [vmem:[%s3 + $0x10] sm:$0xf]
      %v748 = vld [vmem:[%s3 + $0x14] sm:$0xf]
      %v749 = vld [vmem:[%s3 + $0x18] sm:$0xf]
      %v750 = vld [vmem:[%s3 + $0x1c] sm:$0xf]
      %v751 = vld [vmem:[%s3 + $0x20] sm:$0xf]
      %v752 = vld [vmem:[%s3 + $0x24] sm:$0xf]
      %v753 = vld [vmem:[%s3 + $0x28] sm:$0xf]
      %v754 = vld [vmem:[%s3 + $0x2c] sm:$0xf]
      %v755 = vld [vmem:[%s3 + $0x30] sm:$0xf]
      %v756 = vld [vmem:[%s3 + $0x34] sm:$0xf]
      %v757 = vld [vmem:[%s3 + $0x38] sm:$0xf]
      %v758 = vld [vmem:[%s3 + $0x3c] sm:$0xf]
      %v759 = vld [vmem:[%s4] sm:$0x1]
      %v761 = vlaneseq
      %v762 = vshrl.u32 %v761, 7
      %v763 = vsub.s32 0, %v762
      %v764 = vrot.slane %v759, %v763
      %v782 = vunpack.c.l.b16 %v743
      %v783 = vunpack.c.l.b16 %v744
      %v784 = vunpack.c.l.b16 %v745
      %v785 = vunpack.c.l.b16 %v746
      %v786 = vunpack.c.l.b16 %v747
      %v787 = vunpack.c.l.b16 %v748
      %v788 = vunpack.c.l.b16 %v749
      %v789 = vunpack.c.l.b16 %v750
      %v790 = vunpack.c.l.b16 %v751
      %v791 = vunpack.c.l.b16 %v752
      %v792 = vunpack.c.l.b16 %v753
      %v793 = vunpack.c.l.b16 %v754
      %v794 = vunpack.c.l.b16 %v755
      %v795 = vunpack.c.l.b16 %v756
      %v796 = vunpack.c.l.b16 %v757
      %v797 = vunpack.c.l.b16 %v758
      %v798 = vpack.c.b16 %v783, %v782
      %v799 = vpack.c.b16 %v785, %v784
      %v800 = vpack.c.b16 %v787, %v786
      %v801 = vpack.c.b16 %v789, %v788
      %v802 = vpack.c.b16 %v791, %v790
      %v803 = vpack.c.b16 %v793, %v792
      %v804 = vpack.c.b16 %v795, %v794
      %v805 = vpack.c.b16 %v797, %v796
      %814 = vmatprep.subr.bf16.mxu0 0
      %815 = vmatpush1.bf16.msra.mxu0 %v798
      %816 = vmatprep.subr.bf16.mxu0 0
      %817 = vmatpush1.bf16.msra.mxu0 %v799
      %818 = vmatprep.subr.bf16.mxu0 0
      %819 = vmatpush1.bf16.msra.mxu0 %v800
      %820 = vmatprep.subr.bf16.mxu0 0
      %821 = vmatpush1.bf16.msra.mxu0 %v801
      %822 = vmatprep.subr.bf16.mxu0 0
      %823 = vmatpush1.bf16.msra.mxu0 %v802
      %824 = vmatprep.subr.bf16.mxu0 0
      %825 = vmatpush1.bf16.msra.mxu0 %v803
      %826 = vmatprep.subr.bf16.mxu0 0
      %827 = vmatpush1.bf16.msra.mxu0 %v804
      %828 = vmatprep.subr.bf16.mxu0 0
      %829 = vmatpush1.bf16.msra.mxu0 %v805
      %830 = vmatprep.subr.bf16.mxu0 0
      %831 = vmatpush1.bf16.msra.mxu0 0
      %832 = vmatprep.subr.bf16.mxu0 0
      %833 = vmatpush1.bf16.msra.mxu0 0
      %834 = vmatprep.subr.bf16.mxu0 0
      %835 = vmatpush1.bf16.msra.mxu0 0
      %836 = vmatprep.subr.bf16.mxu0 0
      %837 = vmatpush1.bf16.msra.mxu0 0
      %838 = vmatprep.subr.bf16.mxu0 0
      %839 = vmatpush1.bf16.msra.mxu0 0
      %840 = vmatprep.subr.bf16.mxu0 0
      %841 = vmatpush1.bf16.msra.mxu0 0
      %842 = vmatprep.subr.bf16.mxu0 0
      %843 = vmatpush1.bf16.msra.mxu0 0
      %844 = vmatprep.subr.bf16.mxu0 0
      %845 = vmatpush1.bf16.msra.mxu0 0
      %846 = vmatprep.mubr.bf16.mxu0 0
      %847 = vmatmul.mubr.bf16.gmra.mrb[0].mxu0 %v727
      %v848 = vpop.f32.mrb[0].mxu0
      %v849 = vadd.f32 %v764, %v848
      %v850 = vpop.f32.mrb[0].mxu0
      %v851 = vpop.f32.mrb[0].mxu0
      %v852 = vadd.f32 %v764, %v851
      %v853 = vpop.f32.mrb[0].mxu0
      %854 = vmatprep.mubr.bf16.mxu0 0
      %855 = vmatmul.mubr.bf16.gmra.mrb[0].mxu0 %v728
      %v856 = vpop.f32.mrb[0].mxu0
      %v857 = vadd.f32 %v764, %v856
      %v858 = vpop.f32.mrb[0].mxu0
      %v859 = vpop.f32.mrb[0].mxu0
      %v860 = vadd.f32 %v764, %v859
      %v861 = vpop.f32.mrb[0].mxu0
      %862 = vmatprep.mubr.bf16.mxu0 0
      %863 = vmatmul.mubr.bf16.gmra.mrb[0].mxu0 %v729
      %v864 = vpop.f32.mrb[0].mxu0
      %v865 = vadd.f32 %v764, %v864
      %v866 = vpop.f32.mrb[0].mxu0
      %v867 = vpop.f32.mrb[0].mxu0
      %v868 = vadd.f32 %v764, %v867
      %v869 = vpop.f32.mrb[0].mxu0
      %870 = vmatprep.mubr.bf16.mxu0 0
      %871 = vmatmul.mubr.bf16.gmra.mrb[0].mxu0 %v730
      %v872 = vpop.f32.mrb[0].mxu0
      %v873 = vadd.f32 %v764, %v872
      %v874 = vpop.f32.mrb[0].mxu0
      %v875 = vpop.f32.mrb[0].mxu0
      %v876 = vadd.f32 %v764, %v875
      %v877 = vpop.f32.mrb[0].mxu0
      %878 = vmatprep.mubr.bf16.mxu0 0
      %879 = vmatmul.mubr.bf16.gmra.mrb[0].mxu0 %v731
      %v880 = vpop.f32.mrb[0].mxu0
      %v881 = vadd.f32 %v764, %v880
      %v882 = vpop.f32.mrb[0].mxu0
      %v883 = vpop.f32.mrb[0].mxu0
      %v884 = vadd.f32 %v764, %v883
      %v885 = vpop.f32.mrb[0].mxu0
      %886 = vmatprep.mubr.bf16.mxu0 0
      %887 = vmatmul.mubr.bf16.gmra.mrb[0].mxu0 %v732
      %v888 = vpop.f32.mrb[0].mxu0
      %v889 = vadd.f32 %v764, %v888
      %v890 = vpop.f32.mrb[0].mxu0
      %v891 = vpop.f32.mrb[0].mxu0
      %v892 = vadd.f32 %v764, %v891
      %v893 = vpop.f32.mrb[0].mxu0
      %894 = vmatprep.mubr.bf16.mxu0 0
      %895 = vmatmul.mubr.bf16.gmra.mrb[0].mxu0 %v733
      %v896 = vpop.f32.mrb[0].mxu0
      %v897 = vadd.f32 %v764, %v896
      %v898 = vpop.f32.mrb[0].mxu0
      %v899 = vpop.f32.mrb[0].mxu0
      %v900 = vadd.f32 %v764, %v899
      %v901 = vpop.f32.mrb[0].mxu0
      %902 = vmatprep.mubr.bf16.mxu0 0
      %903 = vmatmul.mubr.bf16.gmra.mrb[0].mxu0 %v734
      %v904 = vpop.f32.mrb[0].mxu0
      %v905 = vadd.f32 %v764, %v904
      %v906 = vpop.f32.mrb[0].mxu0
      %v907 = vpop.f32.mrb[0].mxu0
      %v908 = vadd.f32 %v764, %v907
      %v909 = vpop.f32.mrb[0].mxu0
      %910 = vmatprep.mubr.bf16.mxu0 0
      %911 = vmatmul.mubr.bf16.gmra.mrb[0].mxu0 %v735
      %v912 = vpop.f32.mrb[0].mxu0
      %v913 = vadd.f32 %v764, %v912
      %v914 = vpop.f32.mrb[0].mxu0
      %v915 = vpop.f32.mrb[0].mxu0
      %v916 = vadd.f32 %v764, %v915
      %v917 = vpop.f32.mrb[0].mxu0
      %918 = vmatprep.mubr.bf16.mxu0 0
      %919 = vmatmul.mubr.bf16.gmra.mrb[0].mxu0 %v736
      %v920 = vpop.f32.mrb[0].mxu0
      %v921 = vadd.f32 %v764, %v920
      %v922 = vpop.f32.mrb[0].mxu0
      %v923 = vpop.f32.mrb[0].mxu0
      %v924 = vadd.f32 %v764, %v923
      %v925 = vpop.f32.mrb[0].mxu0
      %926 = vmatprep.mubr.bf16.mxu0 0
      %927 = vmatmul.mubr.bf16.gmra.mrb[0].mxu0 %v737
      %v928 = vpop.f32.mrb[0].mxu0
      %v929 = vadd.f32 %v764, %v928
      %v930 = vpop.f32.mrb[0].mxu0
      %v931 = vpop.f32.mrb[0].mxu0
      %v932 = vadd.f32 %v764, %v931
      %v933 = vpop.f32.mrb[0].mxu0
      %934 = vmatprep.mubr.bf16.mxu0 0
      %935 = vmatmul.mubr.bf16.gmra.mrb[0].mxu0 %v738
      %v936 = vpop.f32.mrb[0].mxu0
      %v937 = vadd.f32 %v764, %v936
      %v938 = vpop.f32.mrb[0].mxu0
      %v939 = vpop.f32.mrb[0].mxu0
      %v940 = vadd.f32 %v764, %v939
      %v941 = vpop.f32.mrb[0].mxu0
      %942 = vmatprep.mubr.bf16.mxu0 0
      %943 = vmatmul.mubr.bf16.gmra.mrb[0].mxu0 %v739
      %v944 = vpop.f32.mrb[0].mxu0
      %v945 = vadd.f32 %v764, %v944
      %v946 = vpop.f32.mrb[0].mxu0
      %v947 = vpop.f32.mrb[0].mxu0
      %v948 = vadd.f32 %v764, %v947
      %v949 = vpop.f32.mrb[0].mxu0
      %950 = vmatprep.mubr.bf16.mxu0 0
      %951 = vmatmul.mubr.bf16.gmra.mrb[0].mxu0 %v740
      %v952 = vpop.f32.mrb[0].mxu0
      %v953 = vadd.f32 %v764, %v952
      %v954 = vpop.f32.mrb[0].mxu0
      %v955 = vpop.f32.mrb[0].mxu0
      %v956 = vadd.f32 %v764, %v955
      %v957 = vpop.f32.mrb[0].mxu0
      %958 = vmatprep.mubr.bf16.mxu0 0
      %959 = vmatmul.mubr.bf16.gmra.mrb[0].mxu0 %v741
      %v960 = vpop.f32.mrb[0].mxu0
      %v961 = vadd.f32 %v764, %v960
      %v962 = vpop.f32.mrb[0].mxu0
      %v963 = vpop.f32.mrb[0].mxu0
      %v964 = vadd.f32 %v764, %v963
      %v965 = vpop.f32.mrb[0].mxu0
      %966 = vmatprep.mubr.bf16.mxu0 0
      %967 = vmatmul.mubr.bf16.gmra.mrb[0].mxu0 %v742
      %v968 = vpop.f32.mrb[0].mxu0
      %v969 = vadd.f32 %v764, %v968
      %v970 = vpop.f32.mrb[0].mxu0
      %v971 = vpop.f32.mrb[0].mxu0
      %v972 = vadd.f32 %v764, %v971
      %v973 = vpop.f32.mrb[0].mxu0
      %974 = vdwg.mxu0
      %v975 = vmax.f32 %v849, 0.0
      %v976 = vmax.f32 %v852, 0.0
      %v977 = vmax.f32 %v857, 0.0
      %v978 = vmax.f32 %v860, 0.0
      %v979 = vmax.f32 %v865, 0.0
      %v980 = vmax.f32 %v868, 0.0
      %v981 = vmax.f32 %v873, 0.0
      %v982 = vmax.f32 %v876, 0.0
      %v983 = vmax.f32 %v881, 0.0
      %v984 = vmax.f32 %v884, 0.0
      %v985 = vmax.f32 %v889, 0.0
      %v986 = vmax.f32 %v892, 0.0
      %v987 = vmax.f32 %v897, 0.0
      %v988 = vmax.f32 %v900, 0.0
      %v989 = vmax.f32 %v905, 0.0
      %v990 = vmax.f32 %v908, 0.0
      %v991 = vmax.f32 %v913, 0.0
      %v992 = vmax.f32 %v916, 0.0
      %v993 = vmax.f32 %v921, 0.0
      %v994 = vmax.f32 %v924, 0.0
      %v995 = vmax.f32 %v929, 0.0
      %v996 = vmax.f32 %v932, 0.0
      %v997 = vmax.f32 %v937, 0.0
      %v998 = vmax.f32 %v940, 0.0
      %v999 = vmax.f32 %v945, 0.0
      %v1000 = vmax.f32 %v948, 0.0
      %v1001 = vmax.f32 %v953, 0.0
      %v1002 = vmax.f32 %v956, 0.0
      %v1003 = vmax.f32 %v961, 0.0
      %v1004 = vmax.f32 %v964, 0.0
      %v1005 = vmax.f32 %v969, 0.0
      %v1006 = vmax.f32 %v972, 0.0
      %v1007 = vpack.c.bf16 %v976, %v975
      %v1008 = vpack.c.bf16 %v978, %v977
      %v1009 = vpack.c.bf16 %v980, %v979
      %v1010 = vpack.c.bf16 %v982, %v981
      %v1011 = vpack.c.bf16 %v984, %v983
      %v1012 = vpack.c.bf16 %v986, %v985
      %v1013 = vpack.c.bf16 %v988, %v987
      %v1014 = vpack.c.bf16 %v990, %v989
      %v1015 = vpack.c.bf16 %v992, %v991
      %v1016 = vpack.c.bf16 %v994, %v993
      %v1017 = vpack.c.bf16 %v996, %v995
      %v1018 = vpack.c.bf16 %v998, %v997
      %v1019 = vpack.c.bf16 %v1000, %v999
      %v1020 = vpack.c.bf16 %v1002, %v1001
      %v1021 = vpack.c.bf16 %v1004, %v1003
      %v1022 = vpack.c.bf16 %v1006, %v1005
      %s1023 = scalar_lea.vmem %s3, 64
      %v1024 = vld [vmem:[%s1023] sm:$0xf]
      %v1025 = vld [vmem:[%s1023 + $0x4] sm:$0xf]
      %v1026 = vld [vmem:[%s1023 + $0x8] sm:$0xf]
      %v1027 = vld [vmem:[%s1023 + $0xc] sm:$0xf]
      %v1028 = vld [vmem:[%s1023 + $0x10] sm:$0xf]
      %v1029 = vld [vmem:[%s1023 + $0x14] sm:$0xf]
      %v1030 = vld [vmem:[%s1023 + $0x18] sm:$0xf]
      %v1031 = vld [vmem:[%s1023 + $0x1c] sm:$0xf]
      %v1032 = vld [vmem:[%s1023 + $0x20] sm:$0xf]
      %v1033 = vld [vmem:[%s1023 + $0x24] sm:$0xf]
      %v1034 = vld [vmem:[%s1023 + $0x28] sm:$0xf]
      %v1035 = vld [vmem:[%s1023 + $0x2c] sm:$0xf]
      %v1036 = vld [vmem:[%s1023 + $0x30] sm:$0xf]
      %v1037 = vld [vmem:[%s1023 + $0x34] sm:$0xf]
      %v1038 = vld [vmem:[%s1023 + $0x38] sm:$0xf]
      %v1039 = vld [vmem:[%s1023 + $0x3c] sm:$0xf]
      %s1040 = scalar_lea.vmem %s4, 1
      %v1041 = vld [vmem:[%s1040] sm:$0x1]
      %v1043 = vlaneseq
      %v1044 = vshrl.u32 %v1043, 7
      %v1045 = vsub.s32 0, %v1044
      %v1046 = vrot.slane %v1041, %v1045
      %v1064 = vunpack.c.l.b16 %v1024
      %v1065 = vunpack.c.l.b16 %v1025
      %v1066 = vunpack.c.l.b16 %v1026
      %v1067 = vunpack.c.l.b16 %v1027
      %v1068 = vunpack.c.l.b16 %v1028
      %v1069 = vunpack.c.l.b16 %v1029
      %v1070 = vunpack.c.l.b16 %v1030
      %v1071 = vunpack.c.l.b16 %v1031
      %v1072 = vunpack.c.l.b16 %v1032
      %v1073 = vunpack.c.l.b16 %v1033
      %v1074 = vunpack.c.l.b16 %v1034
      %v1075 = vunpack.c.l.b16 %v1035
      %v1076 = vunpack.c.l.b16 %v1036
      %v1077 = vunpack.c.l.b16 %v1037
      %v1078 = vunpack.c.l.b16 %v1038
      %v1079 = vunpack.c.l.b16 %v1039
      %v1080 = vpack.c.b16 %v1065, %v1064
      %v1081 = vpack.c.b16 %v1067, %v1066
      %v1082 = vpack.c.b16 %v1069, %v1068
      %v1083 = vpack.c.b16 %v1071, %v1070
      %v1084 = vpack.c.b16 %v1073, %v1072
      %v1085 = vpack.c.b16 %v1075, %v1074
      %v1086 = vpack.c.b16 %v1077, %v1076
      %v1087 = vpack.c.b16 %v1079, %v1078
      %1096 = vmatprep.subr.bf16.mxu0 0
      %1097 = vmatpush1.bf16.msra.mxu0 %v1080
      %1098 = vmatprep.subr.bf16.mxu0 0
      %1099 = vmatpush1.bf16.msra.mxu0 %v1081
      %1100 = vmatprep.subr.bf16.mxu0 0
      %1101 = vmatpush1.bf16.msra.mxu0 %v1082
      %1102 = vmatprep.subr.bf16.mxu0 0
      %1103 = vmatpush1.bf16.msra.mxu0 %v1083
      %1104 = vmatprep.subr.bf16.mxu0 0
      %1105 = vmatpush1.bf16.msra.mxu0 %v1084
      %1106 = vmatprep.subr.bf16.mxu0 0
      %1107 = vmatpush1.bf16.msra.mxu0 %v1085
      %1108 = vmatprep.subr.bf16.mxu0 0
      %1109 = vmatpush1.bf16.msra.mxu0 %v1086
      %1110 = vmatprep.subr.bf16.mxu0 0
      %1111 = vmatpush1.bf16.msra.mxu0 %v1087
      %1112 = vmatprep.subr.bf16.mxu0 0
      %1113 = vmatpush1.bf16.msra.mxu0 0
      %1114 = vmatprep.subr.bf16.mxu0 0
      %1115 = vmatpush1.bf16.msra.mxu0 0
      %1116 = vmatprep.subr.bf16.mxu0 0
      %1117 = vmatpush1.bf16.msra.mxu0 0
      %1118 = vmatprep.subr.bf16.mxu0 0
      %1119 = vmatpush1.bf16.msra.mxu0 0
      %1120 = vmatprep.subr.bf16.mxu0 0
      %1121 = vmatpush1.bf16.msra.mxu0 0
      %1122 = vmatprep.subr.bf16.mxu0 0
      %1123 = vmatpush1.bf16.msra.mxu0 0
      %1124 = vmatprep.subr.bf16.mxu0 0
      %1125 = vmatpush1.bf16.msra.mxu0 0
      %1126 = vmatprep.subr.bf16.mxu0 0
      %1127 = vmatpush1.bf16.msra.mxu0 0
      %1128 = vmatprep.mubr.bf16.mxu0 0
      %1129 = vmatmul.mubr.bf16.gmra.mrb[0].mxu0 %v1007
      %v1130 = vpop.f32.mrb[0].mxu0
      %v1131 = vadd.f32 %v1046, %v1130
      %v1132 = vpop.f32.mrb[0].mxu0
      %v1133 = vpop.f32.mrb[0].mxu0
      %v1134 = vadd.f32 %v1046, %v1133
      %v1135 = vpop.f32.mrb[0].mxu0
      %1136 = vmatprep.mubr.bf16.mxu0 0
      %1137 = vmatmul.mubr.bf16.gmra.mrb[0].mxu0 %v1008
      %v1138 = vpop.f32.mrb[0].mxu0
      %v1139 = vadd.f32 %v1046, %v1138
      %v1140 = vpop.f32.mrb[0].mxu0
      %v1141 = vpop.f32.mrb[0].mxu0
      %v1142 = vadd.f32 %v1046, %v1141
      %v1143 = vpop.f32.mrb[0].mxu0
      %1144 = vmatprep.mubr.bf16.mxu0 0
      %1145 = vmatmul.mubr.bf16.gmra.mrb[0].mxu0 %v1009
      %v1146 = vpop.f32.mrb[0].mxu0
      %v1147 = vadd.f32 %v1046, %v1146
      %v1148 = vpop.f32.mrb[0].mxu0
      %v1149 = vpop.f32.mrb[0].mxu0
      %v1150 = vadd.f32 %v1046, %v1149
      %v1151 = vpop.f32.mrb[0].mxu0
      %1152 = vmatprep.mubr.bf16.mxu0 0
      %1153 = vmatmul.mubr.bf16.gmra.mrb[0].mxu0 %v1010
      %v1154 = vpop.f32.mrb[0].mxu0
      %v1155 = vadd.f32 %v1046, %v1154
      %v1156 = vpop.f32.mrb[0].mxu0
      %v1157 = vpop.f32.mrb[0].mxu0
      %v1158 = vadd.f32 %v1046, %v1157
      %v1159 = vpop.f32.mrb[0].mxu0
      %1160 = vmatprep.mubr.bf16.mxu0 0
      %1161 = vmatmul.mubr.bf16.gmra.mrb[0].mxu0 %v1011
      %v1162 = vpop.f32.mrb[0].mxu0
      %v1163 = vadd.f32 %v1046, %v1162
      %v1164 = vpop.f32.mrb[0].mxu0
      %v1165 = vpop.f32.mrb[0].mxu0
      %v1166 = vadd.f32 %v1046, %v1165
      %v1167 = vpop.f32.mrb[0].mxu0
      %1168 = vmatprep.mubr.bf16.mxu0 0
      %1169 = vmatmul.mubr.bf16.gmra.mrb[0].mxu0 %v1012
      %v1170 = vpop.f32.mrb[0].mxu0
      %v1171 = vadd.f32 %v1046, %v1170
      %v1172 = vpop.f32.mrb[0].mxu0
      %v1173 = vpop.f32.mrb[0].mxu0
      %v1174 = vadd.f32 %v1046, %v1173
      %v1175 = vpop.f32.mrb[0].mxu0
      %1176 = vmatprep.mubr.bf16.mxu0 0
      %1177 = vmatmul.mubr.bf16.gmra.mrb[0].mxu0 %v1013
      %v1178 = vpop.f32.mrb[0].mxu0
      %v1179 = vadd.f32 %v1046, %v1178
      %v1180 = vpop.f32.mrb[0].mxu0
      %v1181 = vpop.f32.mrb[0].mxu0
      %v1182 = vadd.f32 %v1046, %v1181
      %v1183 = vpop.f32.mrb[0].mxu0
      %1184 = vmatprep.mubr.bf16.mxu0 0
      %1185 = vmatmul.mubr.bf16.gmra.mrb[0].mxu0 %v1014
      %v1186 = vpop.f32.mrb[0].mxu0
      %v1187 = vadd.f32 %v1046, %v1186
      %v1188 = vpop.f32.mrb[0].mxu0
      %v1189 = vpop.f32.mrb[0].mxu0
      %v1190 = vadd.f32 %v1046, %v1189
      %v1191 = vpop.f32.mrb[0].mxu0
      %1192 = vmatprep.mubr.bf16.mxu0 0
      %1193 = vmatmul.mubr.bf16.gmra.mrb[0].mxu0 %v1015
      %v1194 = vpop.f32.mrb[0].mxu0
      %v1195 = vadd.f32 %v1046, %v1194
      %v1196 = vpop.f32.mrb[0].mxu0
      %v1197 = vpop.f32.mrb[0].mxu0
      %v1198 = vadd.f32 %v1046, %v1197
      %v1199 = vpop.f32.mrb[0].mxu0
      %1200 = vmatprep.mubr.bf16.mxu0 0
      %1201 = vmatmul.mubr.bf16.gmra.mrb[0].mxu0 %v1016
      %v1202 = vpop.f32.mrb[0].mxu0
      %v1203 = vadd.f32 %v1046, %v1202
      %v1204 = vpop.f32.mrb[0].mxu0
      %v1205 = vpop.f32.mrb[0].mxu0
      %v1206 = vadd.f32 %v1046, %v1205
      %v1207 = vpop.f32.mrb[0].mxu0
      %1208 = vmatprep.mubr.bf16.mxu0 0
      %1209 = vmatmul.mubr.bf16.gmra.mrb[0].mxu0 %v1017
      %v1210 = vpop.f32.mrb[0].mxu0
      %v1211 = vadd.f32 %v1046, %v1210
      %v1212 = vpop.f32.mrb[0].mxu0
      %v1213 = vpop.f32.mrb[0].mxu0
      %v1214 = vadd.f32 %v1046, %v1213
      %v1215 = vpop.f32.mrb[0].mxu0
      %1216 = vmatprep.mubr.bf16.mxu0 0
      %1217 = vmatmul.mubr.bf16.gmra.mrb[0].mxu0 %v1018
      %v1218 = vpop.f32.mrb[0].mxu0
      %v1219 = vadd.f32 %v1046, %v1218
      %v1220 = vpop.f32.mrb[0].mxu0
      %v1221 = vpop.f32.mrb[0].mxu0
      %v1222 = vadd.f32 %v1046, %v1221
      %v1223 = vpop.f32.mrb[0].mxu0
      %1224 = vmatprep.mubr.bf16.mxu0 0
      %1225 = vmatmul.mubr.bf16.gmra.mrb[0].mxu0 %v1019
      %v1226 = vpop.f32.mrb[0].mxu0
      %v1227 = vadd.f32 %v1046, %v1226
      %v1228 = vpop.f32.mrb[0].mxu0
      %v1229 = vpop.f32.mrb[0].mxu0
      %v1230 = vadd.f32 %v1046, %v1229
      %v1231 = vpop.f32.mrb[0].mxu0
      %1232 = vmatprep.mubr.bf16.mxu0 0
      %1233 = vmatmul.mubr.bf16.gmra.mrb[0].mxu0 %v1020
      %v1234 = vpop.f32.mrb[0].mxu0
      %v1235 = vadd.f32 %v1046, %v1234
      %v1236 = vpop.f32.mrb[0].mxu0
      %v1237 = vpop.f32.mrb[0].mxu0
      %v1238 = vadd.f32 %v1046, %v1237
      %v1239 = vpop.f32.mrb[0].mxu0
      %1240 = vmatprep.mubr.bf16.mxu0 0
      %1241 = vmatmul.mubr.bf16.gmra.mrb[0].mxu0 %v1021
      %v1242 = vpop.f32.mrb[0].mxu0
      %v1243 = vadd.f32 %v1046, %v1242
      %v1244 = vpop.f32.mrb[0].mxu0
      %v1245 = vpop.f32.mrb[0].mxu0
      %v1246 = vadd.f32 %v1046, %v1245
      %v1247 = vpop.f32.mrb[0].mxu0
      %1248 = vmatprep.mubr.bf16.mxu0 0
      %1249 = vmatmul.mubr.bf16.gmra.mrb[0].mxu0 %v1022
      %v1250 = vpop.f32.mrb[0].mxu0
      %v1251 = vadd.f32 %v1046, %v1250
      %v1252 = vpop.f32.mrb[0].mxu0
      %v1253 = vpop.f32.mrb[0].mxu0
      %v1254 = vadd.f32 %v1046, %v1253
      %v1255 = vpop.f32.mrb[0].mxu0
      %1256 = vdwg.mxu0
      %v1257 = vmax.f32 %v1131, 0.0
      %v1258 = vmax.f32 %v1134, 0.0
      %v1259 = vmax.f32 %v1139, 0.0
      %v1260 = vmax.f32 %v1142, 0.0
      %v1261 = vmax.f32 %v1147, 0.0
      %v1262 = vmax.f32 %v1150, 0.0
      %v1263 = vmax.f32 %v1155, 0.0
      %v1264 = vmax.f32 %v1158, 0.0
      %v1265 = vmax.f32 %v1163, 0.0
      %v1266 = vmax.f32 %v1166, 0.0
      %v1267 = vmax.f32 %v1171, 0.0
      %v1268 = vmax.f32 %v1174, 0.0
      %v1269 = vmax.f32 %v1179, 0.0
      %v1270 = vmax.f32 %v1182, 0.0
      %v1271 = vmax.f32 %v1187, 0.0
      %v1272 = vmax.f32 %v1190, 0.0
      %v1273 = vmax.f32 %v1195, 0.0
      %v1274 = vmax.f32 %v1198, 0.0
      %v1275 = vmax.f32 %v1203, 0.0
      %v1276 = vmax.f32 %v1206, 0.0
      %v1277 = vmax.f32 %v1211, 0.0
      %v1278 = vmax.f32 %v1214, 0.0
      %v1279 = vmax.f32 %v1219, 0.0
      %v1280 = vmax.f32 %v1222, 0.0
      %v1281 = vmax.f32 %v1227, 0.0
      %v1282 = vmax.f32 %v1230, 0.0
      %v1283 = vmax.f32 %v1235, 0.0
      %v1284 = vmax.f32 %v1238, 0.0
      %v1285 = vmax.f32 %v1243, 0.0
      %v1286 = vmax.f32 %v1246, 0.0
      %v1287 = vmax.f32 %v1251, 0.0
      %v1288 = vmax.f32 %v1254, 0.0
      %v1289 = vpack.c.bf16 %v1258, %v1257
      %v1290 = vpack.c.bf16 %v1260, %v1259
      %v1291 = vpack.c.bf16 %v1262, %v1261
      %v1292 = vpack.c.bf16 %v1264, %v1263
      %v1293 = vpack.c.bf16 %v1266, %v1265
      %v1294 = vpack.c.bf16 %v1268, %v1267
      %v1295 = vpack.c.bf16 %v1270, %v1269
      %v1296 = vpack.c.bf16 %v1272, %v1271
      %v1297 = vpack.c.bf16 %v1274, %v1273
      %v1298 = vpack.c.bf16 %v1276, %v1275
      %v1299 = vpack.c.bf16 %v1278, %v1277
      %v1300 = vpack.c.bf16 %v1280, %v1279
      %v1301 = vpack.c.bf16 %v1282, %v1281
      %v1302 = vpack.c.bf16 %v1284, %v1283
      %v1303 = vpack.c.bf16 %v1286, %v1285
      %v1304 = vpack.c.bf16 %v1288, %v1287
      %s1305 = scalar_lea.vmem %s3, 128
      %v1306 = vld [vmem:[%s1305] sm:$0xf]
      %v1307 = vld [vmem:[%s1305 + $0x4] sm:$0xf]
      %v1308 = vld [vmem:[%s1305 + $0x8] sm:$0xf]
      %v1309 = vld [vmem:[%s1305 + $0xc] sm:$0xf]
      %v1310 = vld [vmem:[%s1305 + $0x10] sm:$0xf]
      %v1311 = vld [vmem:[%s1305 + $0x14] sm:$0xf]
      %v1312 = vld [vmem:[%s1305 + $0x18] sm:$0xf]
      %v1313 = vld [vmem:[%s1305 + $0x1c] sm:$0xf]
      %v1314 = vld [vmem:[%s1305 + $0x20] sm:$0xf]
      %v1315 = vld [vmem:[%s1305 + $0x24] sm:$0xf]
      %v1316 = vld [vmem:[%s1305 + $0x28] sm:$0xf]
      %v1317 = vld [vmem:[%s1305 + $0x2c] sm:$0xf]
      %v1318 = vld [vmem:[%s1305 + $0x30] sm:$0xf]
      %v1319 = vld [vmem:[%s1305 + $0x34] sm:$0xf]
      %v1320 = vld [vmem:[%s1305 + $0x38] sm:$0xf]
      %v1321 = vld [vmem:[%s1305 + $0x3c] sm:$0xf]
      %s1322 = scalar_lea.vmem %s4, 2
      %v1323 = vld [vmem:[%s1322] sm:$0x1]
      %v1325 = vlaneseq
      %v1326 = vshrl.u32 %v1325, 7
      %v1327 = vsub.s32 0, %v1326
      %v1328 = vrot.slane %v1323, %v1327
      %v1346 = vunpack.c.l.b16 %v1306
      %v1347 = vunpack.c.l.b16 %v1307
      %v1348 = vunpack.c.l.b16 %v1308
      %v1349 = vunpack.c.l.b16 %v1309
      %v1350 = vunpack.c.l.b16 %v1310
      %v1351 = vunpack.c.l.b16 %v1311
      %v1352 = vunpack.c.l.b16 %v1312
      %v1353 = vunpack.c.l.b16 %v1313
      %v1354 = vunpack.c.l.b16 %v1314
      %v1355 = vunpack.c.l.b16 %v1315
      %v1356 = vunpack.c.l.b16 %v1316
      %v1357 = vunpack.c.l.b16 %v1317
      %v1358 = vunpack.c.l.b16 %v1318
      %v1359 = vunpack.c.l.b16 %v1319
      %v1360 = vunpack.c.l.b16 %v1320
      %v1361 = vunpack.c.l.b16 %v1321
      %v1362 = vpack.c.b16 %v1347, %v1346
      %v1363 = vpack.c.b16 %v1349, %v1348
      %v1364 = vpack.c.b16 %v1351, %v1350
      %v1365 = vpack.c.b16 %v1353, %v1352
      %v1366 = vpack.c.b16 %v1355, %v1354
      %v1367 = vpack.c.b16 %v1357, %v1356
      %v1368 = vpack.c.b16 %v1359, %v1358
      %v1369 = vpack.c.b16 %v1361, %v1360
      %1378 = vmatprep.subr.bf16.mxu0 0
      %1379 = vmatpush1.bf16.msra.mxu0 %v1362
      %1380 = vmatprep.subr.bf16.mxu0 0
      %1381 = vmatpush1.bf16.msra.mxu0 %v1363
      %1382 = vmatprep.subr.bf16.mxu0 0
      %1383 = vmatpush1.bf16.msra.mxu0 %v1364
      %1384 = vmatprep.subr.bf16.mxu0 0
      %1385 = vmatpush1.bf16.msra.mxu0 %v1365
      %1386 = vmatprep.subr.bf16.mxu0 0
      %1387 = vmatpush1.bf16.msra.mxu0 %v1366
      %1388 = vmatprep.subr.bf16.mxu0 0
      %1389 = vmatpush1.bf16.msra.mxu0 %v1367
      %1390 = vmatprep.subr.bf16.mxu0 0
      %1391 = vmatpush1.bf16.msra.mxu0 %v1368
      %1392 = vmatprep.subr.bf16.mxu0 0
      %1393 = vmatpush1.bf16.msra.mxu0 %v1369
      %1394 = vmatprep.subr.bf16.mxu0 0
      %1395 = vmatpush1.bf16.msra.mxu0 0
      %1396 = vmatprep.subr.bf16.mxu0 0
      %1397 = vmatpush1.bf16.msra.mxu0 0
      %1398 = vmatprep.subr.bf16.mxu0 0
      %1399 = vmatpush1.bf16.msra.mxu0 0
      %1400 = vmatprep.subr.bf16.mxu0 0
      %1401 = vmatpush1.bf16.msra.mxu0 0
      %1402 = vmatprep.subr.bf16.mxu0 0
      %1403 = vmatpush1.bf16.msra.mxu0 0
      %1404 = vmatprep.subr.bf16.mxu0 0
      %1405 = vmatpush1.bf16.msra.mxu0 0
      %1406 = vmatprep.subr.bf16.mxu0 0
      %1407 = vmatpush1.bf16.msra.mxu0 0
      %1408 = vmatprep.subr.bf16.mxu0 0
      %1409 = vmatpush1.bf16.msra.mxu0 0
      %1410 = vmatprep.mubr.bf16.mxu0 0
      %1411 = vmatmul.mubr.bf16.gmra.mrb[0].mxu0 %v1289
      %v1412 = vpop.f32.mrb[0].mxu0
      %v1413 = vadd.f32 %v1328, %v1412
      %v1414 = vpop.f32.mrb[0].mxu0
      %v1415 = vpop.f32.mrb[0].mxu0
      %v1416 = vadd.f32 %v1328, %v1415
      %v1417 = vpop.f32.mrb[0].mxu0
      %1418 = vmatprep.mubr.bf16.mxu0 0
      %1419 = vmatmul.mubr.bf16.gmra.mrb[0].mxu0 %v1290
      %v1420 = vpop.f32.mrb[0].mxu0
      %v1421 = vadd.f32 %v1328, %v1420
      %v1422 = vpop.f32.mrb[0].mxu0
      %v1423 = vpop.f32.mrb[0].mxu0
      %v1424 = vadd.f32 %v1328, %v1423
      %v1425 = vpop.f32.mrb[0].mxu0
      %1426 = vmatprep.mubr.bf16.mxu0 0
      %1427 = vmatmul.mubr.bf16.gmra.mrb[0].mxu0 %v1291
      %v1428 = vpop.f32.mrb[0].mxu0
      %v1429 = vadd.f32 %v1328, %v1428
      %v1430 = vpop.f32.mrb[0].mxu0
      %v1431 = vpop.f32.mrb[0].mxu0
      %v1432 = vadd.f32 %v1328, %v1431
      %v1433 = vpop.f32.mrb[0].mxu0
      %1434 = vmatprep.mubr.bf16.mxu0 0
      %1435 = vmatmul.mubr.bf16.gmra.mrb[0].mxu0 %v1292
      %v1436 = vpop.f32.mrb[0].mxu0
      %v1437 = vadd.f32 %v1328, %v1436
      %v1438 = vpop.f32.mrb[0].mxu0
      %v1439 = vpop.f32.mrb[0].mxu0
      %v1440 = vadd.f32 %v1328, %v1439
      %v1441 = vpop.f32.mrb[0].mxu0
      %1442 = vmatprep.mubr.bf16.mxu0 0
      %1443 = vmatmul.mubr.bf16.gmra.mrb[0].mxu0 %v1293
      %v1444 = vpop.f32.mrb[0].mxu0
      %v1445 = vadd.f32 %v1328, %v1444
      %v1446 = vpop.f32.mrb[0].mxu0
      %v1447 = vpop.f32.mrb[0].mxu0
      %v1448 = vadd.f32 %v1328, %v1447
      %v1449 = vpop.f32.mrb[0].mxu0
      %1450 = vmatprep.mubr.bf16.mxu0 0
      %1451 = vmatmul.mubr.bf16.gmra.mrb[0].mxu0 %v1294
      %v1452 = vpop.f32.mrb[0].mxu0
      %v1453 = vadd.f32 %v1328, %v1452
      %v1454 = vpop.f32.mrb[0].mxu0
      %v1455 = vpop.f32.mrb[0].mxu0
      %v1456 = vadd.f32 %v1328, %v1455
      %v1457 = vpop.f32.mrb[0].mxu0
      %1458 = vmatprep.mubr.bf16.mxu0 0
      %1459 = vmatmul.mubr.bf16.gmra.mrb[0].mxu0 %v1295
      %v1460 = vpop.f32.mrb[0].mxu0
      %v1461 = vadd.f32 %v1328, %v1460
      %v1462 = vpop.f32.mrb[0].mxu0
      %v1463 = vpop.f32.mrb[0].mxu0
      %v1464 = vadd.f32 %v1328, %v1463
      %v1465 = vpop.f32.mrb[0].mxu0
      %1466 = vmatprep.mubr.bf16.mxu0 0
      %1467 = vmatmul.mubr.bf16.gmra.mrb[0].mxu0 %v1296
      %v1468 = vpop.f32.mrb[0].mxu0
      %v1469 = vadd.f32 %v1328, %v1468
      %v1470 = vpop.f32.mrb[0].mxu0
      %v1471 = vpop.f32.mrb[0].mxu0
      %v1472 = vadd.f32 %v1328, %v1471
      %v1473 = vpop.f32.mrb[0].mxu0
      %1474 = vmatprep.mubr.bf16.mxu0 0
      %1475 = vmatmul.mubr.bf16.gmra.mrb[0].mxu0 %v1297
      %v1476 = vpop.f32.mrb[0].mxu0
      %v1477 = vadd.f32 %v1328, %v1476
      %v1478 = vpop.f32.mrb[0].mxu0
      %v1479 = vpop.f32.mrb[0].mxu0
      %v1480 = vadd.f32 %v1328, %v1479
      %v1481 = vpop.f32.mrb[0].mxu0
      %1482 = vmatprep.mubr.bf16.mxu0 0
      %1483 = vmatmul.mubr.bf16.gmra.mrb[0].mxu0 %v1298
      %v1484 = vpop.f32.mrb[0].mxu0
      %v1485 = vadd.f32 %v1328, %v1484
      %v1486 = vpop.f32.mrb[0].mxu0
      %v1487 = vpop.f32.mrb[0].mxu0
      %v1488 = vadd.f32 %v1328, %v1487
      %v1489 = vpop.f32.mrb[0].mxu0
      %1490 = vmatprep.mubr.bf16.mxu0 0
      %1491 = vmatmul.mubr.bf16.gmra.mrb[0].mxu0 %v1299
      %v1492 = vpop.f32.mrb[0].mxu0
      %v1493 = vadd.f32 %v1328, %v1492
      %v1494 = vpop.f32.mrb[0].mxu0
      %v1495 = vpop.f32.mrb[0].mxu0
      %v1496 = vadd.f32 %v1328, %v1495
      %v1497 = vpop.f32.mrb[0].mxu0
      %1498 = vmatprep.mubr.bf16.mxu0 0
      %1499 = vmatmul.mubr.bf16.gmra.mrb[0].mxu0 %v1300
      %v1500 = vpop.f32.mrb[0].mxu0
      %v1501 = vadd.f32 %v1328, %v1500
      %v1502 = vpop.f32.mrb[0].mxu0
      %v1503 = vpop.f32.mrb[0].mxu0
      %v1504 = vadd.f32 %v1328, %v1503
      %v1505 = vpop.f32.mrb[0].mxu0
      %1506 = vmatprep.mubr.bf16.mxu0 0
      %1507 = vmatmul.mubr.bf16.gmra.mrb[0].mxu0 %v1301
      %v1508 = vpop.f32.mrb[0].mxu0
      %v1509 = vadd.f32 %v1328, %v1508
      %v1510 = vpop.f32.mrb[0].mxu0
      %v1511 = vpop.f32.mrb[0].mxu0
      %v1512 = vadd.f32 %v1328, %v1511
      %v1513 = vpop.f32.mrb[0].mxu0
      %1514 = vmatprep.mubr.bf16.mxu0 0
      %1515 = vmatmul.mubr.bf16.gmra.mrb[0].mxu0 %v1302
      %v1516 = vpop.f32.mrb[0].mxu0
      %v1517 = vadd.f32 %v1328, %v1516
      %v1518 = vpop.f32.mrb[0].mxu0
      %v1519 = vpop.f32.mrb[0].mxu0
      %v1520 = vadd.f32 %v1328, %v1519
      %v1521 = vpop.f32.mrb[0].mxu0
      %1522 = vmatprep.mubr.bf16.mxu0 0
      %1523 = vmatmul.mubr.bf16.gmra.mrb[0].mxu0 %v1303
      %v1524 = vpop.f32.mrb[0].mxu0
      %v1525 = vadd.f32 %v1328, %v1524
      %v1526 = vpop.f32.mrb[0].mxu0
      %v1527 = vpop.f32.mrb[0].mxu0
      %v1528 = vadd.f32 %v1328, %v1527
      %v1529 = vpop.f32.mrb[0].mxu0
      %1530 = vmatprep.mubr.bf16.mxu0 0
      %1531 = vmatmul.mubr.bf16.gmra.mrb[0].mxu0 %v1304
      %v1532 = vpop.f32.mrb[0].mxu0
      %v1533 = vadd.f32 %v1328, %v1532
      %v1534 = vpop.f32.mrb[0].mxu0
      %v1535 = vpop.f32.mrb[0].mxu0
      %v1536 = vadd.f32 %v1328, %v1535
      %v1537 = vpop.f32.mrb[0].mxu0
      %1538 = vdwg.mxu0
      %v1539 = vmax.f32 %v1413, 0.0
      %v1540 = vmax.f32 %v1416, 0.0
      %v1541 = vmax.f32 %v1421, 0.0
      %v1542 = vmax.f32 %v1424, 0.0
      %v1543 = vmax.f32 %v1429, 0.0
      %v1544 = vmax.f32 %v1432, 0.0
      %v1545 = vmax.f32 %v1437, 0.0
      %v1546 = vmax.f32 %v1440, 0.0
      %v1547 = vmax.f32 %v1445, 0.0
      %v1548 = vmax.f32 %v1448, 0.0
      %v1549 = vmax.f32 %v1453, 0.0
      %v1550 = vmax.f32 %v1456, 0.0
      %v1551 = vmax.f32 %v1461, 0.0
      %v1552 = vmax.f32 %v1464, 0.0
      %v1553 = vmax.f32 %v1469, 0.0
      %v1554 = vmax.f32 %v1472, 0.0
      %v1555 = vmax.f32 %v1477, 0.0
      %v1556 = vmax.f32 %v1480, 0.0
      %v1557 = vmax.f32 %v1485, 0.0
      %v1558 = vmax.f32 %v1488, 0.0
      %v1559 = vmax.f32 %v1493, 0.0
      %v1560 = vmax.f32 %v1496, 0.0
      %v1561 = vmax.f32 %v1501, 0.0
      %v1562 = vmax.f32 %v1504, 0.0
      %v1563 = vmax.f32 %v1509, 0.0
      %v1564 = vmax.f32 %v1512, 0.0
      %v1565 = vmax.f32 %v1517, 0.0
      %v1566 = vmax.f32 %v1520, 0.0
      %v1567 = vmax.f32 %v1525, 0.0
      %v1568 = vmax.f32 %v1528, 0.0
      %v1569 = vmax.f32 %v1533, 0.0
      %v1570 = vmax.f32 %v1536, 0.0
      %v1571 = vpack.c.bf16 %v1540, %v1539
      %v1572 = vpack.c.bf16 %v1542, %v1541
      %v1573 = vpack.c.bf16 %v1544, %v1543
      %v1574 = vpack.c.bf16 %v1546, %v1545
      %v1575 = vpack.c.bf16 %v1548, %v1547
      %v1576 = vpack.c.bf16 %v1550, %v1549
      %v1577 = vpack.c.bf16 %v1552, %v1551
      %v1578 = vpack.c.bf16 %v1554, %v1553
      %v1579 = vpack.c.bf16 %v1556, %v1555
      %v1580 = vpack.c.bf16 %v1558, %v1557
      %v1581 = vpack.c.bf16 %v1560, %v1559
      %v1582 = vpack.c.bf16 %v1562, %v1561
      %v1583 = vpack.c.bf16 %v1564, %v1563
      %v1584 = vpack.c.bf16 %v1566, %v1565
      %v1585 = vpack.c.bf16 %v1568, %v1567
      %v1586 = vpack.c.bf16 %v1570, %v1569
      %v1587 = vld [vmem:[%s5] sm:$0xff]
      %v1588 = vld [vmem:[%s5 + $0x8] sm:$0xff]
      %v1589 = vld [vmem:[%s5 + $0x10] sm:$0xff]
      %v1590 = vld [vmem:[%s5 + $0x18] sm:$0xff]
      %v1591 = vld [vmem:[%s5 + $0x20] sm:$0xff]
      %v1592 = vld [vmem:[%s5 + $0x28] sm:$0xff]
      %v1593 = vld [vmem:[%s5 + $0x30] sm:$0xff]
      %v1594 = vld [vmem:[%s5 + $0x38] sm:$0xff]
      %v1595 = vld [vmem:[%s5 + $0x40] sm:$0xff]
      %v1596 = vld [vmem:[%s5 + $0x48] sm:$0xff]
      %v1597 = vld [vmem:[%s5 + $0x50] sm:$0xff]
      %v1598 = vld [vmem:[%s5 + $0x58] sm:$0xff]
      %v1599 = vld [vmem:[%s5 + $0x60] sm:$0xff]
      %v1600 = vld [vmem:[%s5 + $0x68] sm:$0xff]
      %v1601 = vld [vmem:[%s5 + $0x70] sm:$0xff]
      %v1602 = vld [vmem:[%s5 + $0x78] sm:$0xff]
      %v1603 = vld [vmem:[%s6] sm:$0x3]
      %v1605 = vlaneseq
      %v1606 = vshrl.u32 %v1605, 7
      %v1607 = vsub.s32 0, %v1606
      %v1608 = vrot.slane %v1603, %v1607
      %v1609 = vlaneseq
      %v1610 = vshrl.u32 %v1609, 7
      %v1611 = vsub.s32 1, %v1610
      %v1612 = vrot.slane %v1603, %v1611
      %v1631 = vunpack.c.l.b16 %v1587
      %v1632 = vunpack.c.h.b16 %v1587
      %v1633 = vunpack.c.l.b16 %v1588
      %v1634 = vunpack.c.h.b16 %v1588
      %v1635 = vunpack.c.l.b16 %v1589
      %v1636 = vunpack.c.h.b16 %v1589
      %v1637 = vunpack.c.l.b16 %v1590
      %v1638 = vunpack.c.h.b16 %v1590
      %v1639 = vunpack.c.l.b16 %v1591
      %v1640 = vunpack.c.h.b16 %v1591
      %v1641 = vunpack.c.l.b16 %v1592
      %v1642 = vunpack.c.h.b16 %v1592
      %v1643 = vunpack.c.l.b16 %v1593
      %v1644 = vunpack.c.h.b16 %v1593
      %v1645 = vunpack.c.l.b16 %v1594
      %v1646 = vunpack.c.h.b16 %v1594
      %v1647 = vunpack.c.l.b16 %v1595
      %v1648 = vunpack.c.h.b16 %v1595
      %v1649 = vunpack.c.l.b16 %v1596
      %v1650 = vunpack.c.h.b16 %v1596
      %v1651 = vunpack.c.l.b16 %v1597
      %v1652 = vunpack.c.h.b16 %v1597
      %v1653 = vunpack.c.l.b16 %v1598
      %v1654 = vunpack.c.h.b16 %v1598
      %v1655 = vunpack.c.l.b16 %v1599
      %v1656 = vunpack.c.h.b16 %v1599
      %v1657 = vunpack.c.l.b16 %v1600
      %v1658 = vunpack.c.h.b16 %v1600
      %v1659 = vunpack.c.l.b16 %v1601
      %v1660 = vunpack.c.h.b16 %v1601
      %v1661 = vunpack.c.l.b16 %v1602
      %v1662 = vunpack.c.h.b16 %v1602
      %v1663 = vpack.c.b16 %v1633, %v1631
      %v1664 = vpack.c.b16 %v1634, %v1632
      %v1665 = vpack.c.b16 %v1637, %v1635
      %v1666 = vpack.c.b16 %v1638, %v1636
      %v1667 = vpack.c.b16 %v1641, %v1639
      %v1668 = vpack.c.b16 %v1642, %v1640
      %v1669 = vpack.c.b16 %v1645, %v1643
      %v1670 = vpack.c.b16 %v1646, %v1644
      %v1671 = vpack.c.b16 %v1649, %v1647
      %v1672 = vpack.c.b16 %v1650, %v1648
      %v1673 = vpack.c.b16 %v1653, %v1651
      %v1674 = vpack.c.b16 %v1654, %v1652
      %v1675 = vpack.c.b16 %v1657, %v1655
      %v1676 = vpack.c.b16 %v1658, %v1656
      %v1677 = vpack.c.b16 %v1661, %v1659
      %v1678 = vpack.c.b16 %v1662, %v1660
      %1695 = vmatprep.subr.bf16.mxu0 %v1664
      %1696 = vmatpush1.bf16.msra.mxu0 %v1663
      %1697 = vmatprep.subr.bf16.mxu0 %v1666
      %1698 = vmatpush1.bf16.msra.mxu0 %v1665
      %1699 = vmatprep.subr.bf16.mxu0 %v1668
      %1700 = vmatpush1.bf16.msra.mxu0 %v1667
      %1701 = vmatprep.subr.bf16.mxu0 %v1670
      %1702 = vmatpush1.bf16.msra.mxu0 %v1669
      %1703 = vmatprep.subr.bf16.mxu0 %v1672
      %1704 = vmatpush1.bf16.msra.mxu0 %v1671
      %1705 = vmatprep.subr.bf16.mxu0 %v1674
      %1706 = vmatpush1.bf16.msra.mxu0 %v1673
      %1707 = vmatprep.subr.bf16.mxu0 %v1676
      %1708 = vmatpush1.bf16.msra.mxu0 %v1675
      %1709 = vmatprep.subr.bf16.mxu0 %v1678
      %1710 = vmatpush1.bf16.msra.mxu0 %v1677
      %1711 = vmatprep.subr.bf16.mxu0 0
      %1712 = vmatpush1.bf16.msra.mxu0 0
      %1713 = vmatprep.subr.bf16.mxu0 0
      %1714 = vmatpush1.bf16.msra.mxu0 0
      %1715 = vmatprep.subr.bf16.mxu0 0
      %1716 = vmatpush1.bf16.msra.mxu0 0
      %1717 = vmatprep.subr.bf16.mxu0 0
      %1718 = vmatpush1.bf16.msra.mxu0 0
      %1719 = vmatprep.subr.bf16.mxu0 0
      %1720 = vmatpush1.bf16.msra.mxu0 0
      %1721 = vmatprep.subr.bf16.mxu0 0
      %1722 = vmatpush1.bf16.msra.mxu0 0
      %1723 = vmatprep.subr.bf16.mxu0 0
      %1724 = vmatpush1.bf16.msra.mxu0 0
      %1725 = vmatprep.subr.bf16.mxu0 0
      %1726 = vmatpush1.bf16.msra.mxu0 0
      %1727 = vmatprep.mubr.bf16.mxu0 0
      %1728 = vmatmul.mubr.bf16.gmra.mrb[0].mxu0 %v1571
      %v1729 = vpop.f32.mrb[0].mxu0
      %v1730 = vadd.f32 %v1608, %v1729
      %v1731 = vpop.f32.mrb[0].mxu0
      %v1732 = vadd.f32 %v1612, %v1731
      %v1733 = vpop.f32.mrb[0].mxu0
      %v1734 = vadd.f32 %v1608, %v1733
      %v1735 = vpop.f32.mrb[0].mxu0
      %v1736 = vadd.f32 %v1612, %v1735
      %1737 = vmatprep.mubr.bf16.mxu0 0
      %1738 = vmatmul.mubr.bf16.gmra.mrb[0].mxu0 %v1572
      %v1739 = vpop.f32.mrb[0].mxu0
      %v1740 = vadd.f32 %v1608, %v1739
      %v1741 = vpop.f32.mrb[0].mxu0
      %v1742 = vadd.f32 %v1612, %v1741
      %v1743 = vpop.f32.mrb[0].mxu0
      %v1744 = vadd.f32 %v1608, %v1743
      %v1745 = vpop.f32.mrb[0].mxu0
      %v1746 = vadd.f32 %v1612, %v1745
      %1747 = vmatprep.mubr.bf16.mxu0 0
      %1748 = vmatmul.mubr.bf16.gmra.mrb[0].mxu0 %v1573
      %v1749 = vpop.f32.mrb[0].mxu0
      %v1750 = vadd.f32 %v1608, %v1749
      %v1751 = vpop.f32.mrb[0].mxu0
      %v1752 = vadd.f32 %v1612, %v1751
      %v1753 = vpop.f32.mrb[0].mxu0
      %v1754 = vadd.f32 %v1608, %v1753
      %v1755 = vpop.f32.mrb[0].mxu0
      %v1756 = vadd.f32 %v1612, %v1755
      %1757 = vmatprep.mubr.bf16.mxu0 0
      %1758 = vmatmul.mubr.bf16.gmra.mrb[0].mxu0 %v1574
      %v1759 = vpop.f32.mrb[0].mxu0
      %v1760 = vadd.f32 %v1608, %v1759
      %v1761 = vpop.f32.mrb[0].mxu0
      %v1762 = vadd.f32 %v1612, %v1761
      %v1763 = vpop.f32.mrb[0].mxu0
      %v1764 = vadd.f32 %v1608, %v1763
      %v1765 = vpop.f32.mrb[0].mxu0
      %v1766 = vadd.f32 %v1612, %v1765
      %1767 = vmatprep.mubr.bf16.mxu0 0
      %1768 = vmatmul.mubr.bf16.gmra.mrb[0].mxu0 %v1575
      %v1769 = vpop.f32.mrb[0].mxu0
      %v1770 = vadd.f32 %v1608, %v1769
      %v1771 = vpop.f32.mrb[0].mxu0
      %v1772 = vadd.f32 %v1612, %v1771
      %v1773 = vpop.f32.mrb[0].mxu0
      %v1774 = vadd.f32 %v1608, %v1773
      %v1775 = vpop.f32.mrb[0].mxu0
      %v1776 = vadd.f32 %v1612, %v1775
      %1777 = vmatprep.mubr.bf16.mxu0 0
      %1778 = vmatmul.mubr.bf16.gmra.mrb[0].mxu0 %v1576
      %v1779 = vpop.f32.mrb[0].mxu0
      %v1780 = vadd.f32 %v1608, %v1779
      %v1781 = vpop.f32.mrb[0].mxu0
      %v1782 = vadd.f32 %v1612, %v1781
      %v1783 = vpop.f32.mrb[0].mxu0
      %v1784 = vadd.f32 %v1608, %v1783
      %v1785 = vpop.f32.mrb[0].mxu0
      %v1786 = vadd.f32 %v1612, %v1785
      %1787 = vmatprep.mubr.bf16.mxu0 0
      %1788 = vmatmul.mubr.bf16.gmra.mrb[0].mxu0 %v1577
      %v1789 = vpop.f32.mrb[0].mxu0
      %v1790 = vadd.f32 %v1608, %v1789
      %v1791 = vpop.f32.mrb[0].mxu0
      %v1792 = vadd.f32 %v1612, %v1791
      %v1793 = vpop.f32.mrb[0].mxu0
      %v1794 = vadd.f32 %v1608, %v1793
      %v1795 = vpop.f32.mrb[0].mxu0
      %v1796 = vadd.f32 %v1612, %v1795
      %1797 = vmatprep.mubr.bf16.mxu0 0
      %1798 = vmatmul.mubr.bf16.gmra.mrb[0].mxu0 %v1578
      %v1799 = vpop.f32.mrb[0].mxu0
      %v1800 = vadd.f32 %v1608, %v1799
      %v1801 = vpop.f32.mrb[0].mxu0
      %v1802 = vadd.f32 %v1612, %v1801
      %v1803 = vpop.f32.mrb[0].mxu0
      %v1804 = vadd.f32 %v1608, %v1803
      %v1805 = vpop.f32.mrb[0].mxu0
      %v1806 = vadd.f32 %v1612, %v1805
      %1807 = vmatprep.mubr.bf16.mxu0 0
      %1808 = vmatmul.mubr.bf16.gmra.mrb[0].mxu0 %v1579
      %v1809 = vpop.f32.mrb[0].mxu0
      %v1810 = vadd.f32 %v1608, %v1809
      %v1811 = vpop.f32.mrb[0].mxu0
      %v1812 = vadd.f32 %v1612, %v1811
      %v1813 = vpop.f32.mrb[0].mxu0
      %v1814 = vadd.f32 %v1608, %v1813
      %v1815 = vpop.f32.mrb[0].mxu0
      %v1816 = vadd.f32 %v1612, %v1815
      %1817 = vmatprep.mubr.bf16.mxu0 0
      %1818 = vmatmul.mubr.bf16.gmra.mrb[0].mxu0 %v1580
      %v1819 = vpop.f32.mrb[0].mxu0
      %v1820 = vadd.f32 %v1608, %v1819
      %v1821 = vpop.f32.mrb[0].mxu0
      %v1822 = vadd.f32 %v1612, %v1821
      %v1823 = vpop.f32.mrb[0].mxu0
      %v1824 = vadd.f32 %v1608, %v1823
      %v1825 = vpop.f32.mrb[0].mxu0
      %v1826 = vadd.f32 %v1612, %v1825
      %1827 = vmatprep.mubr.bf16.mxu0 0
      %1828 = vmatmul.mubr.bf16.gmra.mrb[0].mxu0 %v1581
      %v1829 = vpop.f32.mrb[0].mxu0
      %v1830 = vadd.f32 %v1608, %v1829
      %v1831 = vpop.f32.mrb[0].mxu0
      %v1832 = vadd.f32 %v1612, %v1831
      %v1833 = vpop.f32.mrb[0].mxu0
      %v1834 = vadd.f32 %v1608, %v1833
      %v1835 = vpop.f32.mrb[0].mxu0
      %v1836 = vadd.f32 %v1612, %v1835
      %1837 = vmatprep.mubr.bf16.mxu0 0
      %1838 = vmatmul.mubr.bf16.gmra.mrb[0].mxu0 %v1582
      %v1839 = vpop.f32.mrb[0].mxu0
      %v1840 = vadd.f32 %v1608, %v1839
      %v1841 = vpop.f32.mrb[0].mxu0
      %v1842 = vadd.f32 %v1612, %v1841
      %v1843 = vpop.f32.mrb[0].mxu0
      %v1844 = vadd.f32 %v1608, %v1843
      %v1845 = vpop.f32.mrb[0].mxu0
      %v1846 = vadd.f32 %v1612, %v1845
      %1847 = vmatprep.mubr.bf16.mxu0 0
      %1848 = vmatmul.mubr.bf16.gmra.mrb[0].mxu0 %v1583
      %v1849 = vpop.f32.mrb[0].mxu0
      %v1850 = vadd.f32 %v1608, %v1849
      %v1851 = vpop.f32.mrb[0].mxu0
      %v1852 = vadd.f32 %v1612, %v1851
      %v1853 = vpop.f32.mrb[0].mxu0
      %v1854 = vadd.f32 %v1608, %v1853
      %v1855 = vpop.f32.mrb[0].mxu0
      %v1856 = vadd.f32 %v1612, %v1855
      %1857 = vmatprep.mubr.bf16.mxu0 0
      %1858 = vmatmul.mubr.bf16.gmra.mrb[0].mxu0 %v1584
      %v1859 = vpop.f32.mrb[0].mxu0
      %v1860 = vadd.f32 %v1608, %v1859
      %v1861 = vpop.f32.mrb[0].mxu0
      %v1862 = vadd.f32 %v1612, %v1861
      %v1863 = vpop.f32.mrb[0].mxu0
      %v1864 = vadd.f32 %v1608, %v1863
      %v1865 = vpop.f32.mrb[0].mxu0
      %v1866 = vadd.f32 %v1612, %v1865
      %1867 = vmatprep.mubr.bf16.mxu0 0
      %1868 = vmatmul.mubr.bf16.gmra.mrb[0].mxu0 %v1585
      %v1869 = vpop.f32.mrb[0].mxu0
      %v1870 = vadd.f32 %v1608, %v1869
      %v1871 = vpop.f32.mrb[0].mxu0
      %v1872 = vadd.f32 %v1612, %v1871
      %v1873 = vpop.f32.mrb[0].mxu0
      %v1874 = vadd.f32 %v1608, %v1873
      %v1875 = vpop.f32.mrb[0].mxu0
      %v1876 = vadd.f32 %v1612, %v1875
      %1877 = vmatprep.mubr.bf16.mxu0 0
      %1878 = vmatmul.mubr.bf16.gmra.mrb[0].mxu0 %v1586
      %v1879 = vpop.f32.mrb[0].mxu0
      %v1880 = vadd.f32 %v1608, %v1879
      %v1881 = vpop.f32.mrb[0].mxu0
      %v1882 = vadd.f32 %v1612, %v1881
      %v1883 = vpop.f32.mrb[0].mxu0
      %v1884 = vadd.f32 %v1608, %v1883
      %v1885 = vpop.f32.mrb[0].mxu0
      %v1886 = vadd.f32 %v1612, %v1885
      %1887 = vdwg.mxu0
      %v1888 = vmax.f32 %v1730, 0.0
      %v1889 = vmax.f32 %v1734, 0.0
      %v1890 = vmax.f32 %v1740, 0.0
      %v1891 = vmax.f32 %v1744, 0.0
      %v1892 = vmax.f32 %v1750, 0.0
      %v1893 = vmax.f32 %v1754, 0.0
      %v1894 = vmax.f32 %v1760, 0.0
      %v1895 = vmax.f32 %v1764, 0.0
      %v1896 = vmax.f32 %v1770, 0.0
      %v1897 = vmax.f32 %v1774, 0.0
      %v1898 = vmax.f32 %v1780, 0.0
      %v1899 = vmax.f32 %v1784, 0.0
      %v1900 = vmax.f32 %v1790, 0.0
      %v1901 = vmax.f32 %v1794, 0.0
      %v1902 = vmax.f32 %v1800, 0.0
      %v1903 = vmax.f32 %v1804, 0.0
      %v1904 = vmax.f32 %v1810, 0.0
      %v1905 = vmax.f32 %v1814, 0.0
      %v1906 = vmax.f32 %v1820, 0.0
      %v1907 = vmax.f32 %v1824, 0.0
      %v1908 = vmax.f32 %v1830, 0.0
      %v1909 = vmax.f32 %v1834, 0.0
      %v1910 = vmax.f32 %v1840, 0.0
      %v1911 = vmax.f32 %v1844, 0.0
      %v1912 = vmax.f32 %v1850, 0.0
      %v1913 = vmax.f32 %v1854, 0.0
      %v1914 = vmax.f32 %v1860, 0.0
      %v1915 = vmax.f32 %v1864, 0.0
      %v1916 = vmax.f32 %v1870, 0.0
      %v1917 = vmax.f32 %v1874, 0.0
      %v1918 = vmax.f32 %v1880, 0.0
      %v1919 = vmax.f32 %v1884, 0.0
      %v1920 = vpack.c.bf16 %v1889, %v1888
      %v1921 = vpack.c.bf16 %v1891, %v1890
      %v1922 = vpack.c.bf16 %v1893, %v1892
      %v1923 = vpack.c.bf16 %v1895, %v1894
      %v1924 = vpack.c.bf16 %v1897, %v1896
      %v1925 = vpack.c.bf16 %v1899, %v1898
      %v1926 = vpack.c.bf16 %v1901, %v1900
      %v1927 = vpack.c.bf16 %v1903, %v1902
      %v1928 = vpack.c.bf16 %v1905, %v1904
      %v1929 = vpack.c.bf16 %v1907, %v1906
      %v1930 = vpack.c.bf16 %v1909, %v1908
      %v1931 = vpack.c.bf16 %v1911, %v1910
      %v1932 = vpack.c.bf16 %v1913, %v1912
      %v1933 = vpack.c.bf16 %v1915, %v1914
      %v1934 = vpack.c.bf16 %v1917, %v1916
      %v1935 = vpack.c.bf16 %v1919, %v1918
      %v1936 = vld [vmem:[%s7] sm:$0xf]
      %v1937 = vld [vmem:[%s7 + $0x4] sm:$0xf]
      %v1938 = vld [vmem:[%s7 + $0x8] sm:$0xf]
      %v1939 = vld [vmem:[%s7 + $0xc] sm:$0xf]
      %v1940 = vld [vmem:[%s7 + $0x10] sm:$0xf]
      %v1941 = vld [vmem:[%s7 + $0x14] sm:$0xf]
      %v1942 = vld [vmem:[%s7 + $0x18] sm:$0xf]
      %v1943 = vld [vmem:[%s7 + $0x1c] sm:$0xf]
      %v1944 = vld [vmem:[%s7 + $0x20] sm:$0xf]
      %v1945 = vld [vmem:[%s7 + $0x24] sm:$0xf]
      %v1946 = vld [vmem:[%s7 + $0x28] sm:$0xf]
      %v1947 = vld [vmem:[%s7 + $0x2c] sm:$0xf]
      %v1948 = vld [vmem:[%s7 + $0x30] sm:$0xf]
      %v1949 = vld [vmem:[%s7 + $0x34] sm:$0xf]
      %v1950 = vld [vmem:[%s7 + $0x38] sm:$0xf]
      %v1951 = vld [vmem:[%s7 + $0x3c] sm:$0xf]
      %v1968 = vunpack.c.l.b16 %v1936
      %v1969 = vunpack.c.l.b16 %v1937
      %v1970 = vunpack.c.l.b16 %v1938
      %v1971 = vunpack.c.l.b16 %v1939
      %v1972 = vunpack.c.l.b16 %v1940
      %v1973 = vunpack.c.l.b16 %v1941
      %v1974 = vunpack.c.l.b16 %v1942
      %v1975 = vunpack.c.l.b16 %v1943
      %v1976 = vunpack.c.l.b16 %v1944
      %v1977 = vunpack.c.l.b16 %v1945
      %v1978 = vunpack.c.l.b16 %v1946
      %v1979 = vunpack.c.l.b16 %v1947
      %v1980 = vunpack.c.l.b16 %v1948
      %v1981 = vunpack.c.l.b16 %v1949
      %v1982 = vunpack.c.l.b16 %v1950
      %v1983 = vunpack.c.l.b16 %v1951
      %v1984 = vpack.c.b16 %v1969, %v1968
      %v1985 = vpack.c.b16 %v1971, %v1970
      %v1986 = vpack.c.b16 %v1973, %v1972
      %v1987 = vpack.c.b16 %v1975, %v1974
      %v1988 = vpack.c.b16 %v1977, %v1976
      %v1989 = vpack.c.b16 %v1979, %v1978
      %v1990 = vpack.c.b16 %v1981, %v1980
      %v1991 = vpack.c.b16 %v1983, %v1982
      %2000 = vmatprep.subr.bf16.mxu0 0
      %2001 = vmatpush1.bf16.msra.mxu0 %v1984
      %2002 = vmatprep.subr.bf16.mxu0 0
      %2003 = vmatpush1.bf16.msra.mxu0 %v1985
      %2004 = vmatprep.subr.bf16.mxu0 0
      %2005 = vmatpush1.bf16.msra.mxu0 %v1986
      %2006 = vmatprep.subr.bf16.mxu0 0
      %2007 = vmatpush1.bf16.msra.mxu0 %v1987
      %2008 = vmatprep.subr.bf16.mxu0 0
      %2009 = vmatpush1.bf16.msra.mxu0 %v1988
      %2010 = vmatprep.subr.bf16.mxu0 0
      %2011 = vmatpush1.bf16.msra.mxu0 %v1989
      %2012 = vmatprep.subr.bf16.mxu0 0
      %2013 = vmatpush1.bf16.msra.mxu0 %v1990
      %2014 = vmatprep.subr.bf16.mxu0 0
      %2015 = vmatpush1.bf16.msra.mxu0 %v1991
      %2016 = vmatprep.subr.bf16.mxu0 0
      %2017 = vmatpush1.bf16.msra.mxu0 0
      %2018 = vmatprep.subr.bf16.mxu0 0
      %2019 = vmatpush1.bf16.msra.mxu0 0
      %2020 = vmatprep.subr.bf16.mxu0 0
      %2021 = vmatpush1.bf16.msra.mxu0 0
      %2022 = vmatprep.subr.bf16.mxu0 0
      %2023 = vmatpush1.bf16.msra.mxu0 0
      %2024 = vmatprep.subr.bf16.mxu0 0
      %2025 = vmatpush1.bf16.msra.mxu0 0
      %2026 = vmatprep.subr.bf16.mxu0 0
      %2027 = vmatpush1.bf16.msra.mxu0 0
      %2028 = vmatprep.subr.bf16.mxu0 0
      %2029 = vmatpush1.bf16.msra.mxu0 0
      %2030 = vmatprep.subr.bf16.mxu0 0
      %2031 = vmatpush1.bf16.msra.mxu0 0
      %2032 = vmatprep.mubr.bf16.mxu0 0
      %2033 = vmatmul.mubr.bf16.gmra.mrb[0].mxu0 %v1920
      %v2034 = vpop.f32.mrb[0].mxu0
      %v2035 = vadd.f32 %v571, %v2034
      %v2036 = vpop.f32.mrb[0].mxu0
      %v2037 = vpop.f32.mrb[0].mxu0
      %v2038 = vadd.f32 %v575, %v2037
      %v2039 = vpop.f32.mrb[0].mxu0
      %2040 = vmatprep.mubr.bf16.mxu0 0
      %2041 = vmatmul.mubr.bf16.gmra.mrb[0].mxu0 %v1921
      %v2042 = vpop.f32.mrb[0].mxu0
      %v2043 = vadd.f32 %v581, %v2042
      %v2044 = vpop.f32.mrb[0].mxu0
      %v2045 = vpop.f32.mrb[0].mxu0
      %v2046 = vadd.f32 %v585, %v2045
      %v2047 = vpop.f32.mrb[0].mxu0
      %2048 = vmatprep.mubr.bf16.mxu0 0
      %2049 = vmatmul.mubr.bf16.gmra.mrb[0].mxu0 %v1922
      %v2050 = vpop.f32.mrb[0].mxu0
      %v2051 = vadd.f32 %v591, %v2050
      %v2052 = vpop.f32.mrb[0].mxu0
      %v2053 = vpop.f32.mrb[0].mxu0
      %v2054 = vadd.f32 %v595, %v2053
      %v2055 = vpop.f32.mrb[0].mxu0
      %2056 = vmatprep.mubr.bf16.mxu0 0
      %2057 = vmatmul.mubr.bf16.gmra.mrb[0].mxu0 %v1923
      %v2058 = vpop.f32.mrb[0].mxu0
      %v2059 = vadd.f32 %v601, %v2058
      %v2060 = vpop.f32.mrb[0].mxu0
      %v2061 = vpop.f32.mrb[0].mxu0
      %v2062 = vadd.f32 %v605, %v2061
      %v2063 = vpop.f32.mrb[0].mxu0
      %2064 = vmatprep.mubr.bf16.mxu0 0
      %2065 = vmatmul.mubr.bf16.gmra.mrb[0].mxu0 %v1924
      %v2066 = vpop.f32.mrb[0].mxu0
      %v2067 = vadd.f32 %v611, %v2066
      %v2068 = vpop.f32.mrb[0].mxu0
      %v2069 = vpop.f32.mrb[0].mxu0
      %v2070 = vadd.f32 %v615, %v2069
      %v2071 = vpop.f32.mrb[0].mxu0
      %2072 = vmatprep.mubr.bf16.mxu0 0
      %2073 = vmatmul.mubr.bf16.gmra.mrb[0].mxu0 %v1925
      %v2074 = vpop.f32.mrb[0].mxu0
      %v2075 = vadd.f32 %v621, %v2074
      %v2076 = vpop.f32.mrb[0].mxu0
      %v2077 = vpop.f32.mrb[0].mxu0
      %v2078 = vadd.f32 %v625, %v2077
      %v2079 = vpop.f32.mrb[0].mxu0
      %2080 = vmatprep.mubr.bf16.mxu0 0
      %2081 = vmatmul.mubr.bf16.gmra.mrb[0].mxu0 %v1926
      %v2082 = vpop.f32.mrb[0].mxu0
      %v2083 = vadd.f32 %v631, %v2082
      %v2084 = vpop.f32.mrb[0].mxu0
      %v2085 = vpop.f32.mrb[0].mxu0
      %v2086 = vadd.f32 %v635, %v2085
      %v2087 = vpop.f32.mrb[0].mxu0
      %2088 = vmatprep.mubr.bf16.mxu0 0
      %2089 = vmatmul.mubr.bf16.gmra.mrb[0].mxu0 %v1927
      %v2090 = vpop.f32.mrb[0].mxu0
      %v2091 = vadd.f32 %v641, %v2090
      %v2092 = vpop.f32.mrb[0].mxu0
      %v2093 = vpop.f32.mrb[0].mxu0
      %v2094 = vadd.f32 %v645, %v2093
      %v2095 = vpop.f32.mrb[0].mxu0
      %2096 = vmatprep.mubr.bf16.mxu0 0
      %2097 = vmatmul.mubr.bf16.gmra.mrb[0].mxu0 %v1928
      %v2098 = vpop.f32.mrb[0].mxu0
      %v2099 = vadd.f32 %v651, %v2098
      %v2100 = vpop.f32.mrb[0].mxu0
      %v2101 = vpop.f32.mrb[0].mxu0
      %v2102 = vadd.f32 %v655, %v2101
      %v2103 = vpop.f32.mrb[0].mxu0
      %2104 = vmatprep.mubr.bf16.mxu0 0
      %2105 = vmatmul.mubr.bf16.gmra.mrb[0].mxu0 %v1929
      %v2106 = vpop.f32.mrb[0].mxu0
      %v2107 = vadd.f32 %v661, %v2106
      %v2108 = vpop.f32.mrb[0].mxu0
      %v2109 = vpop.f32.mrb[0].mxu0
      %v2110 = vadd.f32 %v665, %v2109
      %v2111 = vpop.f32.mrb[0].mxu0
      %2112 = vmatprep.mubr.bf16.mxu0 0
      %2113 = vmatmul.mubr.bf16.gmra.mrb[0].mxu0 %v1930
      %v2114 = vpop.f32.mrb[0].mxu0
      %v2115 = vadd.f32 %v671, %v2114
      %v2116 = vpop.f32.mrb[0].mxu0
      %v2117 = vpop.f32.mrb[0].mxu0
      %v2118 = vadd.f32 %v675, %v2117
      %v2119 = vpop.f32.mrb[0].mxu0
      %2120 = vmatprep.mubr.bf16.mxu0 0
      %2121 = vmatmul.mubr.bf16.gmra.mrb[0].mxu0 %v1931
      %v2122 = vpop.f32.mrb[0].mxu0
      %v2123 = vadd.f32 %v681, %v2122
      %v2124 = vpop.f32.mrb[0].mxu0
      %v2125 = vpop.f32.mrb[0].mxu0
      %v2126 = vadd.f32 %v685, %v2125
      %v2127 = vpop.f32.mrb[0].mxu0
      %2128 = vmatprep.mubr.bf16.mxu0 0
      %2129 = vmatmul.mubr.bf16.gmra.mrb[0].mxu0 %v1932
      %v2130 = vpop.f32.mrb[0].mxu0
      %v2131 = vadd.f32 %v691, %v2130
      %v2132 = vpop.f32.mrb[0].mxu0
      %v2133 = vpop.f32.mrb[0].mxu0
      %v2134 = vadd.f32 %v695, %v2133
      %v2135 = vpop.f32.mrb[0].mxu0
      %2136 = vmatprep.mubr.bf16.mxu0 0
      %2137 = vmatmul.mubr.bf16.gmra.mrb[0].mxu0 %v1933
      %v2138 = vpop.f32.mrb[0].mxu0
      %v2139 = vadd.f32 %v701, %v2138
      %v2140 = vpop.f32.mrb[0].mxu0
      %v2141 = vpop.f32.mrb[0].mxu0
      %v2142 = vadd.f32 %v705, %v2141
      %v2143 = vpop.f32.mrb[0].mxu0
      %2144 = vmatprep.mubr.bf16.mxu0 0
      %2145 = vmatmul.mubr.bf16.gmra.mrb[0].mxu0 %v1934
      %v2146 = vpop.f32.mrb[0].mxu0
      %v2147 = vadd.f32 %v711, %v2146
      %v2148 = vpop.f32.mrb[0].mxu0
      %v2149 = vpop.f32.mrb[0].mxu0
      %v2150 = vadd.f32 %v715, %v2149
      %v2151 = vpop.f32.mrb[0].mxu0
      %2152 = vmatprep.mubr.bf16.mxu0 0
      %2153 = vmatmul.mubr.bf16.gmra.mrb[0].mxu0 %v1935
      %v2154 = vpop.f32.mrb[0].mxu0
      %v2155 = vadd.f32 %v721, %v2154
      %v2156 = vpop.f32.mrb[0].mxu0
      %v2157 = vpop.f32.mrb[0].mxu0
      %v2158 = vadd.f32 %v725, %v2157
      %v2159 = vpop.f32.mrb[0].mxu0
      %2160 = vdwg.mxu0
      %v2161 = vmax.f32 %v2035, 0.0
      %v2162 = vmax.f32 %v2038, 0.0
      %v2163 = vmax.f32 %v2043, 0.0
      %v2164 = vmax.f32 %v2046, 0.0
      %v2165 = vmax.f32 %v2051, 0.0
      %v2166 = vmax.f32 %v2054, 0.0
      %v2167 = vmax.f32 %v2059, 0.0
      %v2168 = vmax.f32 %v2062, 0.0
      %v2169 = vmax.f32 %v2067, 0.0
      %v2170 = vmax.f32 %v2070, 0.0
      %v2171 = vmax.f32 %v2075, 0.0
      %v2172 = vmax.f32 %v2078, 0.0
      %v2173 = vmax.f32 %v2083, 0.0
      %v2174 = vmax.f32 %v2086, 0.0
      %v2175 = vmax.f32 %v2091, 0.0
      %v2176 = vmax.f32 %v2094, 0.0
      %v2177 = vmax.f32 %v2099, 0.0
      %v2178 = vmax.f32 %v2102, 0.0
      %v2179 = vmax.f32 %v2107, 0.0
      %v2180 = vmax.f32 %v2110, 0.0
      %v2181 = vmax.f32 %v2115, 0.0
      %v2182 = vmax.f32 %v2118, 0.0
      %v2183 = vmax.f32 %v2123, 0.0
      %v2184 = vmax.f32 %v2126, 0.0
      %v2185 = vmax.f32 %v2131, 0.0
      %v2186 = vmax.f32 %v2134, 0.0
      %v2187 = vmax.f32 %v2139, 0.0
      %v2188 = vmax.f32 %v2142, 0.0
      %v2189 = vmax.f32 %v2147, 0.0
      %v2190 = vmax.f32 %v2150, 0.0
      %v2191 = vmax.f32 %v2155, 0.0
      %v2192 = vmax.f32 %v2158, 0.0
      %v2193 = vpack.c.bf16 %v2162, %v2161
      %v2194 = vpack.c.bf16 %v2164, %v2163
      %v2195 = vpack.c.bf16 %v2166, %v2165
      %v2196 = vpack.c.bf16 %v2168, %v2167
      %v2197 = vpack.c.bf16 %v2170, %v2169
      %v2198 = vpack.c.bf16 %v2172, %v2171
      %v2199 = vpack.c.bf16 %v2174, %v2173
      %v2200 = vpack.c.bf16 %v2176, %v2175
      %v2201 = vpack.c.bf16 %v2178, %v2177
      %v2202 = vpack.c.bf16 %v2180, %v2179
      %v2203 = vpack.c.bf16 %v2182, %v2181
      %v2204 = vpack.c.bf16 %v2184, %v2183
      %v2205 = vpack.c.bf16 %v2186, %v2185
      %v2206 = vpack.c.bf16 %v2188, %v2187
      %v2207 = vpack.c.bf16 %v2190, %v2189
      %v2208 = vpack.c.bf16 %v2192, %v2191
      %v2209 = vld [vmem:[%s8] sm:$0xf]
      %v2210 = vld [vmem:[%s8 + $0x4] sm:$0xf]
      %v2211 = vld [vmem:[%s8 + $0x8] sm:$0xf]
      %v2212 = vld [vmem:[%s8 + $0xc] sm:$0xf]
      %v2213 = vld [vmem:[%s8 + $0x10] sm:$0xf]
      %v2214 = vld [vmem:[%s8 + $0x14] sm:$0xf]
      %v2215 = vld [vmem:[%s8 + $0x18] sm:$0xf]
      %v2216 = vld [vmem:[%s8 + $0x1c] sm:$0xf]
      %v2217 = vld [vmem:[%s9] sm:$0x1]
      %v2219 = vlaneseq
      %v2220 = vshrl.u32 %v2219, 7
      %v2221 = vsub.s32 0, %v2220
      %v2222 = vrot.slane %v2217, %v2221
      %v2232 = vunpack.c.l.b16 %v2209
      %v2233 = vunpack.c.l.b16 %v2210
      %v2234 = vunpack.c.l.b16 %v2211
      %v2235 = vunpack.c.l.b16 %v2212
      %v2236 = vunpack.c.l.b16 %v2213
      %v2237 = vunpack.c.l.b16 %v2214
      %v2238 = vunpack.c.l.b16 %v2215
      %v2239 = vunpack.c.l.b16 %v2216
      %v2240 = vpack.c.b16 %v2233, %v2232
      %v2241 = vpack.c.b16 %v2235, %v2234
      %v2242 = vpack.c.b16 %v2237, %v2236
      %v2243 = vpack.c.b16 %v2239, %v2238
      %vm2248 = vcmask 523264
      %v2250 = vsel %vm2248, %v2193, 0
      %v2253 = vsel %vm2248, %v2194, 0
      %v2256 = vsel %vm2248, %v2195, 0
      %v2259 = vsel %vm2248, %v2196, 0
      %v2262 = vsel %vm2248, %v2197, 0
      %v2265 = vsel %vm2248, %v2198, 0
      %v2268 = vsel %vm2248, %v2199, 0
      %v2271 = vsel %vm2248, %v2200, 0
      %v2274 = vsel %vm2248, %v2201, 0
      %v2277 = vsel %vm2248, %v2202, 0
      %v2280 = vsel %vm2248, %v2203, 0
      %v2283 = vsel %vm2248, %v2204, 0
      %v2286 = vsel %vm2248, %v2205, 0
      %v2289 = vsel %vm2248, %v2206, 0
      %v2292 = vsel %vm2248, %v2207, 0
      %v2295 = vsel %vm2248, %v2208, 0
      %2297 = vmatprep.subr.bf16.mxu0 0
      %2298 = vmatpush1.bf16.msra.mxu0 %v2240
      %2299 = vmatprep.subr.bf16.mxu0 0
      %2300 = vmatpush1.bf16.msra.mxu0 %v2241
      %2301 = vmatprep.subr.bf16.mxu0 0
      %2302 = vmatpush1.bf16.msra.mxu0 %v2242
      %2303 = vmatprep.subr.bf16.mxu0 0
      %2304 = vmatpush1.bf16.msra.mxu0 %v2243
      %2305 = vmatprep.subr.bf16.mxu0 0
      %2306 = vmatpush1.bf16.msra.mxu0 0
      %2307 = vmatprep.subr.bf16.mxu0 0
      %2308 = vmatpush1.bf16.msra.mxu0 0
      %2309 = vmatprep.subr.bf16.mxu0 0
      %2310 = vmatpush1.bf16.msra.mxu0 0
      %2311 = vmatprep.subr.bf16.mxu0 0
      %2312 = vmatpush1.bf16.msra.mxu0 0
      %2313 = vmatprep.subr.bf16.mxu0 0
      %2314 = vmatpush1.bf16.msra.mxu0 0
      %2315 = vmatprep.subr.bf16.mxu0 0
      %2316 = vmatpush1.bf16.msra.mxu0 0
      %2317 = vmatprep.subr.bf16.mxu0 0
      %2318 = vmatpush1.bf16.msra.mxu0 0
      %2319 = vmatprep.subr.bf16.mxu0 0
      %2320 = vmatpush1.bf16.msra.mxu0 0
      %2321 = vmatprep.subr.bf16.mxu0 0
      %2322 = vmatpush1.bf16.msra.mxu0 0
      %2323 = vmatprep.subr.bf16.mxu0 0
      %2324 = vmatpush1.bf16.msra.mxu0 0
      %2325 = vmatprep.subr.bf16.mxu0 0
      %2326 = vmatpush1.bf16.msra.mxu0 0
      %2327 = vmatprep.subr.bf16.mxu0 0
      %2328 = vmatpush1.bf16.msra.mxu0 0
      %2329 = vmatprep.mubr.bf16.mxu0 0
      %2330 = vmatmul.mubr.bf16.gmra.mrb[0].mxu0 %v2250
      %v2331 = vpop.f32.mrb[0].mxu0
      %v2332 = vadd.f32 %v2222, %v2331
      %v2333 = vpop.f32.mrb[0].mxu0
      %v2334 = vpop.f32.mrb[0].mxu0
      %v2335 = vadd.f32 %v2222, %v2334
      %v2336 = vpop.f32.mrb[0].mxu0
      %2337 = vmatprep.mubr.bf16.mxu0 0
      %2338 = vmatmul.mubr.bf16.gmra.mrb[0].mxu0 %v2253
      %v2339 = vpop.f32.mrb[0].mxu0
      %v2340 = vadd.f32 %v2222, %v2339
      %v2341 = vpop.f32.mrb[0].mxu0
      %v2342 = vpop.f32.mrb[0].mxu0
      %v2343 = vadd.f32 %v2222, %v2342
      %v2344 = vpop.f32.mrb[0].mxu0
      %2345 = vmatprep.mubr.bf16.mxu0 0
      %2346 = vmatmul.mubr.bf16.gmra.mrb[0].mxu0 %v2256
      %v2347 = vpop.f32.mrb[0].mxu0
      %v2348 = vadd.f32 %v2222, %v2347
      %v2349 = vpop.f32.mrb[0].mxu0
      %v2350 = vpop.f32.mrb[0].mxu0
      %v2351 = vadd.f32 %v2222, %v2350
      %v2352 = vpop.f32.mrb[0].mxu0
      %2353 = vmatprep.mubr.bf16.mxu0 0
      %2354 = vmatmul.mubr.bf16.gmra.mrb[0].mxu0 %v2259
      %v2355 = vpop.f32.mrb[0].mxu0
      %v2356 = vadd.f32 %v2222, %v2355
      %v2357 = vpop.f32.mrb[0].mxu0
      %v2358 = vpop.f32.mrb[0].mxu0
      %v2359 = vadd.f32 %v2222, %v2358
      %v2360 = vpop.f32.mrb[0].mxu0
      %2361 = vmatprep.mubr.bf16.mxu0 0
      %2362 = vmatmul.mubr.bf16.gmra.mrb[0].mxu0 %v2262
      %v2363 = vpop.f32.mrb[0].mxu0
      %v2364 = vadd.f32 %v2222, %v2363
      %v2365 = vpop.f32.mrb[0].mxu0
      %v2366 = vpop.f32.mrb[0].mxu0
      %v2367 = vadd.f32 %v2222, %v2366
      %v2368 = vpop.f32.mrb[0].mxu0
      %2369 = vmatprep.mubr.bf16.mxu0 0
      %2370 = vmatmul.mubr.bf16.gmra.mrb[0].mxu0 %v2265
      %v2371 = vpop.f32.mrb[0].mxu0
      %v2372 = vadd.f32 %v2222, %v2371
      %v2373 = vpop.f32.mrb[0].mxu0
      %v2374 = vpop.f32.mrb[0].mxu0
      %v2375 = vadd.f32 %v2222, %v2374
      %v2376 = vpop.f32.mrb[0].mxu0
      %2377 = vmatprep.mubr.bf16.mxu0 0
      %2378 = vmatmul.mubr.bf16.gmra.mrb[0].mxu0 %v2268
      %v2379 = vpop.f32.mrb[0].mxu0
      %v2380 = vadd.f32 %v2222, %v2379
      %v2381 = vpop.f32.mrb[0].mxu0
      %v2382 = vpop.f32.mrb[0].mxu0
      %v2383 = vadd.f32 %v2222, %v2382
      %v2384 = vpop.f32.mrb[0].mxu0
      %2385 = vmatprep.mubr.bf16.mxu0 0
      %2386 = vmatmul.mubr.bf16.gmra.mrb[0].mxu0 %v2271
      %v2387 = vpop.f32.mrb[0].mxu0
      %v2388 = vadd.f32 %v2222, %v2387
      %v2389 = vpop.f32.mrb[0].mxu0
      %v2390 = vpop.f32.mrb[0].mxu0
      %v2391 = vadd.f32 %v2222, %v2390
      %v2392 = vpop.f32.mrb[0].mxu0
      %2393 = vmatprep.mubr.bf16.mxu0 0
      %2394 = vmatmul.mubr.bf16.gmra.mrb[0].mxu0 %v2274
      %v2395 = vpop.f32.mrb[0].mxu0
      %v2396 = vadd.f32 %v2222, %v2395
      %v2397 = vpop.f32.mrb[0].mxu0
      %v2398 = vpop.f32.mrb[0].mxu0
      %v2399 = vadd.f32 %v2222, %v2398
      %v2400 = vpop.f32.mrb[0].mxu0
      %2401 = vmatprep.mubr.bf16.mxu0 0
      %2402 = vmatmul.mubr.bf16.gmra.mrb[0].mxu0 %v2277
      %v2403 = vpop.f32.mrb[0].mxu0
      %v2404 = vadd.f32 %v2222, %v2403
      %v2405 = vpop.f32.mrb[0].mxu0
      %v2406 = vpop.f32.mrb[0].mxu0
      %v2407 = vadd.f32 %v2222, %v2406
      %v2408 = vpop.f32.mrb[0].mxu0
      %2409 = vmatprep.mubr.bf16.mxu0 0
      %2410 = vmatmul.mubr.bf16.gmra.mrb[0].mxu0 %v2280
      %v2411 = vpop.f32.mrb[0].mxu0
      %v2412 = vadd.f32 %v2222, %v2411
      %v2413 = vpop.f32.mrb[0].mxu0
      %v2414 = vpop.f32.mrb[0].mxu0
      %v2415 = vadd.f32 %v2222, %v2414
      %v2416 = vpop.f32.mrb[0].mxu0
      %2417 = vmatprep.mubr.bf16.mxu0 0
      %2418 = vmatmul.mubr.bf16.gmra.mrb[0].mxu0 %v2283
      %v2419 = vpop.f32.mrb[0].mxu0
      %v2420 = vadd.f32 %v2222, %v2419
      %v2421 = vpop.f32.mrb[0].mxu0
      %v2422 = vpop.f32.mrb[0].mxu0
      %v2423 = vadd.f32 %v2222, %v2422
      %v2424 = vpop.f32.mrb[0].mxu0
      %2425 = vmatprep.mubr.bf16.mxu0 0
      %2426 = vmatmul.mubr.bf16.gmra.mrb[0].mxu0 %v2286
      %v2427 = vpop.f32.mrb[0].mxu0
      %v2428 = vadd.f32 %v2222, %v2427
      %v2429 = vpop.f32.mrb[0].mxu0
      %v2430 = vpop.f32.mrb[0].mxu0
      %v2431 = vadd.f32 %v2222, %v2430
      %v2432 = vpop.f32.mrb[0].mxu0
      %2433 = vmatprep.mubr.bf16.mxu0 0
      %2434 = vmatmul.mubr.bf16.gmra.mrb[0].mxu0 %v2289
      %v2435 = vpop.f32.mrb[0].mxu0
      %v2436 = vadd.f32 %v2222, %v2435
      %v2437 = vpop.f32.mrb[0].mxu0
      %v2438 = vpop.f32.mrb[0].mxu0
      %v2439 = vadd.f32 %v2222, %v2438
      %v2440 = vpop.f32.mrb[0].mxu0
      %2441 = vmatprep.mubr.bf16.mxu0 0
      %2442 = vmatmul.mubr.bf16.gmra.mrb[0].mxu0 %v2292
      %v2443 = vpop.f32.mrb[0].mxu0
      %v2444 = vadd.f32 %v2222, %v2443
      %v2445 = vpop.f32.mrb[0].mxu0
      %v2446 = vpop.f32.mrb[0].mxu0
      %v2447 = vadd.f32 %v2222, %v2446
      %v2448 = vpop.f32.mrb[0].mxu0
      %2449 = vmatprep.mubr.bf16.mxu0 0
      %2450 = vmatmul.mubr.bf16.gmra.mrb[0].mxu0 %v2295
      %v2451 = vpop.f32.mrb[0].mxu0
      %v2452 = vadd.f32 %v2222, %v2451
      %v2453 = vpop.f32.mrb[0].mxu0
      %v2454 = vpop.f32.mrb[0].mxu0
      %v2455 = vadd.f32 %v2222, %v2454
      %v2456 = vpop.f32.mrb[0].mxu0
      %2457 = vdwg.mxu0
      %v2458 = vlaneseq
      %v2459 = vand.u32 %v2458, 127
      %vm2460 = vcmp.eq.s32.totalorder %v2459, 3
      %v2461 = vsel %vm2460, 1, 0
      %vm2462 = vcmp.eq.s32.totalorder %v2461, 1
      %2464 = vset.pattern.permute.xlu0 0
      %2465 = vperm.xlu0 %2464, %v1732
      %v2466 = vpop.permute.xlu0 %2465
      %2469 = vset.pattern.permute.xlu0 0
      %2470 = vperm.xlu0 %2469, %v1736
      %v2471 = vpop.permute.xlu0 %2470
      %2474 = vset.pattern.permute.xlu0 0
      %2475 = vperm.xlu0 %2474, %v1742
      %v2476 = vpop.permute.xlu0 %2475
      %2479 = vset.pattern.permute.xlu0 0
      %2480 = vperm.xlu0 %2479, %v1746
      %v2481 = vpop.permute.xlu0 %2480
      %2484 = vset.pattern.permute.xlu0 0
      %2485 = vperm.xlu0 %2484, %v1752
      %v2486 = vpop.permute.xlu0 %2485
      %2489 = vset.pattern.permute.xlu0 0
      %2490 = vperm.xlu0 %2489, %v1756
      %v2491 = vpop.permute.xlu0 %2490
      %2494 = vset.pattern.permute.xlu0 0
      %2495 = vperm.xlu0 %2494, %v1762
      %v2496 = vpop.permute.xlu0 %2495
      %2499 = vset.pattern.permute.xlu0 0
      %2500 = vperm.xlu0 %2499, %v1766
      %v2501 = vpop.permute.xlu0 %2500
      %2504 = vset.pattern.permute.xlu0 0
      %2505 = vperm.xlu0 %2504, %v1772
      %v2506 = vpop.permute.xlu0 %2505
      %2509 = vset.pattern.permute.xlu0 0
      %2510 = vperm.xlu0 %2509, %v1776
      %v2511 = vpop.permute.xlu0 %2510
      %2514 = vset.pattern.permute.xlu0 0
      %2515 = vperm.xlu0 %2514, %v1782
      %v2516 = vpop.permute.xlu0 %2515
      %2519 = vset.pattern.permute.xlu0 0
      %2520 = vperm.xlu0 %2519, %v1786
      %v2521 = vpop.permute.xlu0 %2520
      %2524 = vset.pattern.permute.xlu0 0
      %2525 = vperm.xlu0 %2524, %v1792
      %v2526 = vpop.permute.xlu0 %2525
      %2529 = vset.pattern.permute.xlu0 0
      %2530 = vperm.xlu0 %2529, %v1796
      %v2531 = vpop.permute.xlu0 %2530
      %2534 = vset.pattern.permute.xlu0 0
      %2535 = vperm.xlu0 %2534, %v1802
      %v2536 = vpop.permute.xlu0 %2535
      %2539 = vset.pattern.permute.xlu0 0
      %2540 = vperm.xlu0 %2539, %v1806
      %v2541 = vpop.permute.xlu0 %2540
      %2544 = vset.pattern.permute.xlu0 0
      %2545 = vperm.xlu0 %2544, %v1812
      %v2546 = vpop.permute.xlu0 %2545
      %2549 = vset.pattern.permute.xlu0 0
      %2550 = vperm.xlu0 %2549, %v1816
      %v2551 = vpop.permute.xlu0 %2550
      %2554 = vset.pattern.permute.xlu0 0
      %2555 = vperm.xlu0 %2554, %v1822
      %v2556 = vpop.permute.xlu0 %2555
      %2559 = vset.pattern.permute.xlu0 0
      %2560 = vperm.xlu0 %2559, %v1826
      %v2561 = vpop.permute.xlu0 %2560
      %2564 = vset.pattern.permute.xlu0 0
      %2565 = vperm.xlu0 %2564, %v1832
      %v2566 = vpop.permute.xlu0 %2565
      %2569 = vset.pattern.permute.xlu0 0
      %2570 = vperm.xlu0 %2569, %v1836
      %v2571 = vpop.permute.xlu0 %2570
      %2574 = vset.pattern.permute.xlu0 0
      %2575 = vperm.xlu0 %2574, %v1842
      %v2576 = vpop.permute.xlu0 %2575
      %2579 = vset.pattern.permute.xlu0 0
      %2580 = vperm.xlu0 %2579, %v1846
      %v2581 = vpop.permute.xlu0 %2580
      %2584 = vset.pattern.permute.xlu0 0
      %2585 = vperm.xlu0 %2584, %v1852
      %v2586 = vpop.permute.xlu0 %2585
      %2589 = vset.pattern.permute.xlu0 0
      %2590 = vperm.xlu0 %2589, %v1856
      %v2591 = vpop.permute.xlu0 %2590
      %2594 = vset.pattern.permute.xlu0 0
      %2595 = vperm.xlu0 %2594, %v1862
      %v2596 = vpop.permute.xlu0 %2595
      %2599 = vset.pattern.permute.xlu0 0
      %2600 = vperm.xlu0 %2599, %v1866
      %v2601 = vpop.permute.xlu0 %2600
      %2604 = vset.pattern.permute.xlu0 0
      %2605 = vperm.xlu0 %2604, %v1872
      %v2606 = vpop.permute.xlu0 %2605
      %2609 = vset.pattern.permute.xlu0 0
      %2610 = vperm.xlu0 %2609, %v1876
      %v2611 = vpop.permute.xlu0 %2610
      %2614 = vset.pattern.permute.xlu0 0
      %2615 = vperm.xlu0 %2614, %v1882
      %v2616 = vpop.permute.xlu0 %2615
      %2619 = vset.pattern.permute.xlu0 0
      %2620 = vperm.xlu0 %2619, %v1886
      %v2621 = vpop.permute.xlu0 %2620
      %v2623 = vsel %vm2462, %v2466, 0.0
      %v2624 = vsel %vm2462, %v2471, 0.0
      %v2625 = vsel %vm2462, %v2476, 0.0
      %v2626 = vsel %vm2462, %v2481, 0.0
      %v2627 = vsel %vm2462, %v2486, 0.0
      %v2628 = vsel %vm2462, %v2491, 0.0
      %v2629 = vsel %vm2462, %v2496, 0.0
      %v2630 = vsel %vm2462, %v2501, 0.0
      %v2631 = vsel %vm2462, %v2506, 0.0
      %v2632 = vsel %vm2462, %v2511, 0.0
      %v2633 = vsel %vm2462, %v2516, 0.0
      %v2634 = vsel %vm2462, %v2521, 0.0
      %v2635 = vsel %vm2462, %v2526, 0.0
      %v2636 = vsel %vm2462, %v2531, 0.0
      %v2637 = vsel %vm2462, %v2536, 0.0
      %v2638 = vsel %vm2462, %v2541, 0.0
      %v2639 = vsel %vm2462, %v2546, 0.0
      %v2640 = vsel %vm2462, %v2551, 0.0
      %v2641 = vsel %vm2462, %v2556, 0.0
      %v2642 = vsel %vm2462, %v2561, 0.0
      %v2643 = vsel %vm2462, %v2566, 0.0
      %v2644 = vsel %vm2462, %v2571, 0.0
      %v2645 = vsel %vm2462, %v2576, 0.0
      %v2646 = vsel %vm2462, %v2581, 0.0
      %v2647 = vsel %vm2462, %v2586, 0.0
      %v2648 = vsel %vm2462, %v2591, 0.0
      %v2649 = vsel %vm2462, %v2596, 0.0
      %v2650 = vsel %vm2462, %v2601, 0.0
      %v2651 = vsel %vm2462, %v2606, 0.0
      %v2652 = vsel %vm2462, %v2611, 0.0
      %v2653 = vsel %vm2462, %v2616, 0.0
      %v2654 = vsel %vm2462, %v2621, 0.0
      %v2655 = vadd.f32 %v2332, %v2623
      %v2656 = vadd.f32 %v2335, %v2624
      %v2657 = vadd.f32 %v2340, %v2625
      %v2658 = vadd.f32 %v2343, %v2626
      %v2659 = vadd.f32 %v2348, %v2627
      %v2660 = vadd.f32 %v2351, %v2628
      %v2661 = vadd.f32 %v2356, %v2629
      %v2662 = vadd.f32 %v2359, %v2630
      %v2663 = vadd.f32 %v2364, %v2631
      %v2664 = vadd.f32 %v2367, %v2632
      %v2665 = vadd.f32 %v2372, %v2633
      %v2666 = vadd.f32 %v2375, %v2634
      %v2667 = vadd.f32 %v2380, %v2635
      %v2668 = vadd.f32 %v2383, %v2636
      %v2669 = vadd.f32 %v2388, %v2637
      %v2670 = vadd.f32 %v2391, %v2638
      %v2671 = vadd.f32 %v2396, %v2639
      %v2672 = vadd.f32 %v2399, %v2640
      %v2673 = vadd.f32 %v2404, %v2641
      %v2674 = vadd.f32 %v2407, %v2642
      %v2675 = vadd.f32 %v2412, %v2643
      %v2676 = vadd.f32 %v2415, %v2644
      %v2677 = vadd.f32 %v2420, %v2645
      %v2678 = vadd.f32 %v2423, %v2646
      %v2679 = vadd.f32 %v2428, %v2647
      %v2680 = vadd.f32 %v2431, %v2648
      %v2681 = vadd.f32 %v2436, %v2649
      %v2682 = vadd.f32 %v2439, %v2650
      %v2683 = vadd.f32 %v2444, %v2651
      %v2684 = vadd.f32 %v2447, %v2652
      %v2685 = vadd.f32 %v2452, %v2653
      %v2686 = vadd.f32 %v2455, %v2654
      %vm2687 = vcmask 31744
      %2688 = vst.msk [vmem:[%s361] sm:$0xff] %vm2687, %v2655
      %2689 = vst.msk [vmem:[%s361 + $0x8] sm:$0xff] %vm2687, %v2656
      %2690 = vst.msk [vmem:[%s361 + $0x10] sm:$0xff] %vm2687, %v2657
      %2691 = vst.msk [vmem:[%s361 + $0x18] sm:$0xff] %vm2687, %v2658
      %2692 = vst.msk [vmem:[%s361 + $0x20] sm:$0xff] %vm2687, %v2659
      %2693 = vst.msk [vmem:[%s361 + $0x28] sm:$0xff] %vm2687, %v2660
      %2694 = vst.msk [vmem:[%s361 + $0x30] sm:$0xff] %vm2687, %v2661
      %2695 = vst.msk [vmem:[%s361 + $0x38] sm:$0xff] %vm2687, %v2662
      %2696 = vst.msk [vmem:[%s361 + $0x40] sm:$0xff] %vm2687, %v2663
      %2697 = vst.msk [vmem:[%s361 + $0x48] sm:$0xff] %vm2687, %v2664
      %2698 = vst.msk [vmem:[%s361 + $0x50] sm:$0xff] %vm2687, %v2665
      %2699 = vst.msk [vmem:[%s361 + $0x58] sm:$0xff] %vm2687, %v2666
      %2700 = vst.msk [vmem:[%s361 + $0x60] sm:$0xff] %vm2687, %v2667
      %2701 = vst.msk [vmem:[%s361 + $0x68] sm:$0xff] %vm2687, %v2668
      %2702 = vst.msk [vmem:[%s361 + $0x70] sm:$0xff] %vm2687, %v2669
      %2703 = vst.msk [vmem:[%s361 + $0x78] sm:$0xff] %vm2687, %v2670
      %2704 = vst.msk [vmem:[%s361 + $0x80] sm:$0xff] %vm2687, %v2671
      %2705 = vst.msk [vmem:[%s361 + $0x88] sm:$0xff] %vm2687, %v2672
      %2706 = vst.msk [vmem:[%s361 + $0x90] sm:$0xff] %vm2687, %v2673
      %2707 = vst.msk [vmem:[%s361 + $0x98] sm:$0xff] %vm2687, %v2674
      %2708 = vst.msk [vmem:[%s361 + $0xa0] sm:$0xff] %vm2687, %v2675
      %2709 = vst.msk [vmem:[%s361 + $0xa8] sm:$0xff] %vm2687, %v2676
      %2710 = vst.msk [vmem:[%s361 + $0xb0] sm:$0xff] %vm2687, %v2677
      %2711 = vst.msk [vmem:[%s361 + $0xb8] sm:$0xff] %vm2687, %v2678
      %2712 = vst.msk [vmem:[%s361 + $0xc0] sm:$0xff] %vm2687, %v2679
      %2713 = vst.msk [vmem:[%s361 + $0xc8] sm:$0xff] %vm2687, %v2680
      %2714 = vst.msk [vmem:[%s361 + $0xd0] sm:$0xff] %vm2687, %v2681
      %2715 = vst.msk [vmem:[%s361 + $0xd8] sm:$0xff] %vm2687, %v2682
      %2716 = vst.msk [vmem:[%s361 + $0xe0] sm:$0xff] %vm2687, %v2683
      %2717 = vst.msk [vmem:[%s361 + $0xe8] sm:$0xff] %vm2687, %v2684
      %2718 = vst.msk [vmem:[%s361 + $0xf0] sm:$0xff] %vm2687, %v2685
      %2719 = vst.msk [vmem:[%s361 + $0xf8] sm:$0xff] %vm2687, %v2686
      %s2720 = smul.u32 32, %s21
      %p2721 = scmp.lt.s32.totalorder %s2720, 63
      %s2722 = scalar_select %p2721, %s2720, 63
      %s2723 = smul.addr %s2722, 8
      %s2724 = scalar_lea.vmem %s10, %s2723
      // Predicated region
      $region61: #{tpu_custom_call.1} parent=59 // pred_check
        %p2725 = pneg %p254
      $region62: #{tpu_custom_call.1} parent=59 // pred_check_branch
        %2727 = sbr.rel (%p2725) target = $region64
      $region63: #{tpu_custom_call.1} parent=59 // pred_region
        %s2728 = smul.u32 32, %s21
      $region64: #{tpu_custom_call.1} parent=59 // pred_fallthru
        _
    $region60: #{tpu_custom_call.1} parent=5 // pred_fallthru
      _
    %p2729 = scmp.le.s32.totalorder 2, %s16
    // Predicated region
    $region65: #{tpu_custom_call.1} parent=5 // pred_check
      %p2730 = pneg %p2729
    $region66: #{tpu_custom_call.1} parent=5 // pred_check_branch
      %2732 = sbr.rel (%p2730) target = $region68
    $region67: #{tpu_custom_call.1} parent=5 // pred_region
      %s2733 = ssub.s32 %s16, 2
      // Predicated region
      $region69: #{tpu_custom_call.1} parent=67 // pred_check
        %p2734 = pneg %p260
      $region70: #{tpu_custom_call.1} parent=67 // pred_check_branch
        %2736 = sbr.rel (%p2734) target = $region72
      $region71: #{tpu_custom_call.1} parent=67 // pred_region
        %s2737 = smul.u32 32, %s22
        %p2738 = scmp.lt.s32.totalorder %s2737, 63
        %s2739 = scalar_select %p2738, %s2737, 63
        %s2740 = smul.addr %s2739, 8
        %s2741 = scalar_lea.vmem %s10, %s2740
      $region72: #{tpu_custom_call.1} parent=67 // pred_fallthru
        _
    $region68: #{tpu_custom_call.1} parent=5 // pred_fallthru
      _
  $region6: #{tpu_custom_call.1} parent=0 // loop_footer
    %s20 = sadd.s32 1, %s16
  $region7: #{tpu_custom_call.1} parent=0 // loop_footer_branch
    %15 = sbr.rel target = $region3
  $region8: #{tpu_custom_call.1} parent=0 // loop_exit
    _

</llo_original>
